<compile_context>
chip_gen: v7x
topology: tpu7x:2x2x1
jax: 0.10.0
libtpu: 0.0.40
codegen_flags: <defaults>
</compile_context>

<pallas_src>
import functools

import numpy as np
import jax
import jax.numpy as jnp
from jax import lax
from jax.experimental import pallas as pl
from jax.experimental.pallas import tpu as pltpu

BN_EPS = 0.8          # nn.BatchNorm2d(out_filters, 0.8): second positional arg is eps
LEAKY_SLOPE = 0.2


# --------------------------------------------------------------------------
# helpers
# --------------------------------------------------------------------------
def _round_up(x, m):
    return (x + m - 1) // m * m


def _pick_tile(dim_padded, cap, gran):
    """Largest tile <= cap that is a multiple of `gran` and divides dim_padded."""
    if dim_padded <= cap:
        return dim_padded
    t = cap - (cap % gran)
    for cand in range(t, gran - 1, -gran):
        if dim_padded % cand == 0:
            return cand
    return gran  # gran always divides dim_padded


def _pad2d(a, rows, cols, dtype):
    r, c = a.shape
    a = a.astype(dtype)
    if r == rows and c == cols:
        return a
    return jnp.zeros((rows, cols), dtype).at[:r, :c].set(a)


def _pad_vec(v, cols):
    n = v.shape[0]
    v = v.astype(jnp.float32)
    if n == cols:
        return v.reshape(1, cols)
    return jnp.zeros((1, cols), jnp.float32).at[0, :n].set(v)


# --------------------------------------------------------------------------
# Pallas kernel: tiled  O = epilogue(X @ W),  f32 accumulation over K tiles
#   epilogue = (+bias) -> [LeakyReLU(0.2)] -> (*scale + shift)
# --------------------------------------------------------------------------
def _fused_gemm_kernel(x_ref, w_ref, b_ref, scale_ref, shift_ref, o_ref,
                       acc_ref, *, apply_act):
    k = pl.program_id(2)

    @pl.when(k == 0)
    def _():
        acc_ref[...] = jnp.zeros_like(acc_ref)

    acc_ref[...] += jnp.dot(x_ref[...], w_ref[...],
                            preferred_element_type=jnp.float32)

    @pl.when(k == pl.num_programs(2) - 1)
    def _():
        acc = acc_ref[...] + b_ref[...]                    # bias (1, TN) broadcast
        if apply_act:
            acc = jnp.where(acc > 0.0, acc, LEAKY_SLOPE * acc)   # LeakyReLU(0.2)
        o_ref[...] = (acc * scale_ref[...] + shift_ref[...]).astype(o_ref.dtype)


def fused_matmul(x, w, b, scale, shift, *, apply_act, out_dtype=jnp.float32,
                 tm_cap=512, tk_cap=512, tn_cap=256):
    """x: (M, K), w: (K, N), b/scale/shift: (N,).  Returns (M, N) in out_dtype."""
    M, K = x.shape
    K2, N = w.shape
    assert K2 == K

    Mp = _round_up(M, 8)
    Kp = _round_up(K, 128)
    Np = _round_up(N, 128)
    tm = _pick_tile(Mp, tm_cap, 8)
    tk = _pick_tile(Kp, tk_cap, 128)
    tn = _pick_tile(Np, tn_cap, 128)

    xp = _pad2d(x, Mp, Kp, jnp.bfloat16)
    wp = _pad2d(w, Kp, Np, jnp.bfloat16)
    bp = _pad_vec(b, Np)
    sp = _pad_vec(scale, Np)
    hp = _pad_vec(shift, Np)

    grid = (Mp // tm, Np // tn, Kp // tk)
    kernel = functools.partial(_fused_gemm_kernel, apply_act=apply_act)
    out_itemsize = np.dtype(out_dtype).itemsize

    out = pl.pallas_call(
        kernel,
        out_shape=jax.ShapeDtypeStruct((Mp, Np), out_dtype),
        grid_spec=pltpu.PrefetchScalarGridSpec(
            num_scalar_prefetch=0,
            grid=grid,
            in_specs=[
                pl.BlockSpec((tm, tk), lambda i, j, k: (i, k)),   # X tile
                pl.BlockSpec((tk, tn), lambda i, j, k: (k, j)),   # W tile
                pl.BlockSpec((1, tn), lambda i, j, k: (0, j)),    # bias  (resident over k)
                pl.BlockSpec((1, tn), lambda i, j, k: (0, j)),    # scale (resident over k)
                pl.BlockSpec((1, tn), lambda i, j, k: (0, j)),    # shift (resident over k)
            ],
            out_specs=pl.BlockSpec((tm, tn), lambda i, j, k: (i, j)),
            scratch_shapes=[pltpu.VMEM((tm, tn), jnp.float32)],
        ),
        compiler_params=pltpu.CompilerParams(
            dimension_semantics=("parallel", "parallel", "arbitrary"),
            vmem_limit_bytes=32 * 1024 * 1024,
        ),
        cost_estimate=pl.CostEstimate(
            flops=2 * Mp * Np * Kp,
            transcendentals=0,
            bytes_accessed=Mp * Kp * 2 + Kp * Np * 2 + Mp * Np * out_itemsize,
        ),
    )(xp, wp, bp, sp, hp)

    if Mp == M and Np == N:
        return out
    return out[:M, :N]


# --------------------------------------------------------------------------
# Glue: im2col for 3x3 / stride 2 / pad 1 convolution (NHWC, bf16)
# --------------------------------------------------------------------------
def im2col_3x3_s2_p1(x):
    B, H, W, C = x.shape
    Ho = (H + 2 - 3) // 2 + 1
    Wo = (W + 2 - 3) // 2 + 1
    xp = jnp.pad(x, ((0, 0), (1, 1), (1, 1), (0, 0)))
    cols = []
    for dh in range(3):
        for dw in range(3):
            cols.append(xp[:, dh:dh + 2 * Ho:2, dw:dw + 2 * Wo:2, :])
    patches = jnp.stack(cols, axis=3)            # (B, Ho, Wo, 9, C)
    return patches.reshape(B * Ho * Wo, 9 * C), Ho, Wo


# --------------------------------------------------------------------------
# Parameters (PyTorch-layout synthetic init, used by the reference)
# --------------------------------------------------------------------------
def init_params(key, channels, img_size, latent_dim):
    out_channels = [16, 32, 64, 128]
    blocks = []
    c_in = channels
    for i, c_out in enumerate(out_channels):
        key, kw, kb, kg, kbeta = jax.random.split(key, 5)
        blk = {
            "w": jax.random.normal(kw, (c_out, c_in, 3, 3), jnp.float32) * 0.1,
            "b": jax.random.normal(kb, (c_out,), jnp.float32) * 0.1,
            "bn": i > 0,
        }
        if blk["bn"]:
            blk["gamma"] = 1.0 + 0.1 * jax.random.normal(kg, (c_out,), jnp.float32)
            blk["beta"] = 0.1 * jax.random.normal(kbeta, (c_out,), jnp.float32)
            blk["running_mean"] = jnp.zeros((c_out,), jnp.float32)
            blk["running_var"] = jnp.ones((c_out,), jnp.float32)
        blocks.append(blk)
        c_in = c_out

    ds = img_size // (2 ** 4)
    key, kwl, kbl = jax.random.split(key, 3)
    lin_w = jax.random.normal(kwl, (latent_dim, 128 * ds * ds), jnp.float32) * 0.1
    lin_b = jax.random.normal(kbl, (latent_dim,), jnp.float32) * 0.1
    return {"blocks": blocks, "lin_w": lin_w, "lin_b": lin_b}


def prepare_params(params, img_size):
    """One-time layout folding: conv OIHW -> (9*Cin, Cout) bf16 GEMM weights,
    BN folded to (scale, shift), Linear weight permuted to NHWC flatten order
    and pre-transposed to (K, latent)."""
    prepped = {"blocks": []}
    for blk in params["blocks"]:
        c_out, c_in = blk["w"].shape[0], blk["w"].shape[1]
        # (Cout, Cin, kh, kw) -> (kh, kw, Cin, Cout) -> (9*Cin, Cout)
        w_mat = jnp.transpose(blk["w"], (2, 3, 1, 0)).reshape(9 * c_in, c_out)
        if blk["bn"]:
            inv = blk["gamma"] / jnp.sqrt(blk["running_var"] + BN_EPS)
            scale = inv
            shift = blk["beta"] - blk["running_mean"] * inv
        else:
            scale = jnp.ones((c_out,), jnp.float32)
            shift = jnp.zeros((c_out,), jnp.float32)
        prepped["blocks"].append({
            "w": w_mat.astype(jnp.bfloat16),
            "b": blk["b"].astype(jnp.float32),
            "scale": scale.astype(jnp.float32),
            "shift": shift.astype(jnp.float32),
        })
    ds = img_size // (2 ** 4)
    latent = params["lin_w"].shape[0]
    # PyTorch flattens NCHW (c*ds*ds + h*ds + w); we flatten NHWC (h*ds*128 + w*128 + c).
    lin_w_nhwc = jnp.transpose(
        params["lin_w"].reshape(latent, 128, ds, ds), (2, 3, 1, 0)
    ).reshape(128 * ds * ds, latent)
    prepped["lin_w"] = lin_w_nhwc.astype(jnp.bfloat16)
    prepped["lin_b"] = params["lin_b"].astype(jnp.float32)
    return prepped


# --------------------------------------------------------------------------
# Encoder forward (Pallas hot path)
# --------------------------------------------------------------------------
@jax.jit
def encoder_forward(img_nchw, params):
    x = jnp.transpose(img_nchw, (0, 2, 3, 1)).astype(jnp.bfloat16)   # NCHW -> NHWC
    B = x.shape[0]

    for blk in params["blocks"]:
        c_out = blk["w"].shape[1]
        patches, Ho, Wo = im2col_3x3_s2_p1(x)            # (B*Ho*Wo, 9*Cin) bf16
        y = fused_matmul(patches, blk["w"], blk["b"], blk["scale"], blk["shift"],
                         apply_act=True, out_dtype=jnp.bfloat16)
        x = y.reshape(B, Ho, Wo, c_out)

    # Flatten in NHWC order; the Linear weight was permuted at prep time to match.
    feat = x.reshape(B, -1)
    latent_dim = params["lin_w"].shape[1]
    ones = jnp.ones((latent_dim,), jnp.float32)
    zeros = jnp.zeros((latent_dim,), jnp.float32)
    return fused_matmul(feat, params["lin_w"], params["lin_b"], ones, zeros,
                        apply_act=False, out_dtype=jnp.float32)


# --------------------------------------------------------------------------
# Pure-JAX f32 reference (sanity check; not part of the kernel path)
# --------------------------------------------------------------------------
def encoder_reference(img_nchw, params):
    x = img_nchw.astype(jnp.float32)
    for blk in params["blocks"]:
        x = lax.conv_general_dilated(
            x, blk["w"], window_strides=(2, 2), padding=((1, 1), (1, 1)),
            dimension_numbers=("NCHW", "OIHW", "NCHW"))
        x = x + blk["b"][None, :, None, None]
        x = jnp.where(x > 0.0, x, LEAKY_SLOPE * x)
        if blk["bn"]:
            inv = blk["gamma"] / jnp.sqrt(blk["running_var"] + BN_EPS)
            x = ((x - blk["running_mean"][None, :, None, None]) *
                 inv[None, :, None, None] + blk["beta"][None, :, None, None])
    feat = x.reshape(x.shape[0], -1)
    return feat @ params["lin_w"].T + params["lin_b"][None, :]


# --------------------------------------------------------------------------
if __name__ == "__main__":
    batch = 2
    channels = 4
    img_size = 16
    latent_dim = 32

    key = jax.random.PRNGKey(0)
    key, k_img = jax.random.split(key)
    img = jax.random.normal(k_img, (batch, channels, img_size, img_size), jnp.float32)

    raw_params = init_params(key, channels, img_size, latent_dim)
    params = prepare_params(raw_params, img_size)

    out = jax.block_until_ready(encoder_forward(img, params))
    ref = jax.block_until_ready(encoder_reference(img, raw_params))

    max_abs_err = float(jnp.max(jnp.abs(out - ref)))
    assert out.shape == (batch, latent_dim), out.shape
    assert max_abs_err < 1e-1, f"mismatch vs reference: {max_abs_err}"

    print("KERNEL_OK")
</pallas_src>

<mosaic_0001>
module attributes {stable_mosaic.version = 11 : i64} {
  func.func @_fused_gemm_kernel(%arg0: i32, %arg1: i32, %arg2: i32, %arg3: memref<128x128xbf16, #tpu.memory_space<vmem>>, %arg4: memref<128x128xbf16, #tpu.memory_space<vmem>>, %arg5: memref<1x128xf32, #tpu.memory_space<vmem>>, %arg6: memref<1x128xf32, #tpu.memory_space<vmem>>, %arg7: memref<1x128xf32, #tpu.memory_space<vmem>>, %arg8: memref<128x128xbf16, #tpu.memory_space<vmem>>, %arg9: memref<128x128xf32, #tpu.memory_space<vmem>>) attributes {dimension_semantics = [#tpu.dimension_semantics<parallel>, #tpu.dimension_semantics<parallel>, #tpu.dimension_semantics<arbitrary>], iteration_bounds = array<i64: 1, 1, 1>, scalar_prefetch = 0 : i64, scratch_operands = 1 : i64, tpu.core_type = #tpu.core_type<tc>, window_params = [{transform_indices = @transform_0, window_bounds = array<i64: 128, 128>}, {transform_indices = @transform_1, window_bounds = array<i64: 128, 128>}, {transform_indices = @transform_2, window_bounds = array<i64: 1, 128>}, {transform_indices = @transform_3, window_bounds = array<i64: 1, 128>}, {transform_indices = @transform_4, window_bounds = array<i64: 1, 128>}, {transform_indices = @transform_5, window_bounds = array<i64: 128, 128>}]} {
    %c0_i32 = arith.constant 0 : i32
    %0 = arith.cmpi eq, %arg2, %c0_i32 : i32
    %1 = arith.extui %0 : i1 to i32
    %c0_i32_0 = arith.constant 0 : i32
    %2 = arith.cmpi ne, %1, %c0_i32_0 : i32
    scf.if %2 {
      %cst_10 = arith.constant 0.000000e+00 : f32
      %12 = vector.broadcast %cst_10 : f32 to vector<128x128xf32>
      %c0_11 = arith.constant 0 : index
      %c0_12 = arith.constant 0 : index
      %13 = vector.load %arg9[%c0_11, %c0_12] : memref<128x128xf32, #tpu.memory_space<vmem>>, vector<128x128xf32>
      tpu.vector_store %arg9[%c0_11, %c0_12], %12 {strides = array<i32>} : memref<128x128xf32, #tpu.memory_space<vmem>>, vector<128x128xf32>,
    } else {
    }
    %c0 = arith.constant 0 : index
    %c0_1 = arith.constant 0 : index
    %3 = vector.load %arg9[%c0, %c0_1] : memref<128x128xf32, #tpu.memory_space<vmem>>, vector<128x128xf32>
    %c0_2 = arith.constant 0 : index
    %c0_3 = arith.constant 0 : index
    %4 = vector.load %arg3[%c0_2, %c0_3] : memref<128x128xbf16, #tpu.memory_space<vmem>>, vector<128x128xbf16>
    %c0_4 = arith.constant 0 : index
    %c0_5 = arith.constant 0 : index
    %5 = vector.load %arg4[%c0_4, %c0_5] : memref<128x128xbf16, #tpu.memory_space<vmem>>, vector<128x128xbf16>
    %cst = arith.constant dense<0.000000e+00> : vector<128x128xf32>
    %6 = tpu.matmul %4, %5, %cst {dimension_numbers = #tpu.dot_dimension_numbers<[1], [0], [0], [1], [0, 0, 1, 1], [], []>} : vector<128x128xbf16>, vector<128x128xbf16>, vector<128x128xf32> -> vector<128x128xf32>
    %7 = arith.addf %3, %6 : vector<128x128xf32>
    %c0_6 = arith.constant 0 : index
    %c0_7 = arith.constant 0 : index
    %8 = vector.load %arg9[%c0_6, %c0_7] : memref<128x128xf32, #tpu.memory_space<vmem>>, vector<128x128xf32>
    tpu.vector_store %arg9[%c0_6, %c0_7], %7 {strides = array<i32>} : memref<128x128xf32, #tpu.memory_space<vmem>>, vector<128x128xf32>,
    %c0_i32_8 = arith.constant 0 : i32
    %9 = arith.cmpi eq, %arg2, %c0_i32_8 : i32
    %10 = arith.extui %9 : i1 to i32
    %c0_i32_9 = arith.constant 0 : i32
    %11 = arith.cmpi ne, %10, %c0_i32_9 : i32
    scf.if %11 {
      %c0_10 = arith.constant 0 : index
      %c0_11 = arith.constant 0 : index
      %12 = vector.load %arg9[%c0_10, %c0_11] : memref<128x128xf32, #tpu.memory_space<vmem>>, vector<128x128xf32>
      %c0_12 = arith.constant 0 : index
      %c0_13 = arith.constant 0 : index
      %13 = vector.load %arg5[%c0_12, %c0_13] : memref<1x128xf32, #tpu.memory_space<vmem>>, vector<1x128xf32>
      %14 = vector.broadcast %13 : vector<1x128xf32> to vector<128x128xf32>
      %15 = arith.addf %12, %14 : vector<128x128xf32>
      %cst_14 = arith.constant 0.000000e+00 : f32
      %16 = vector.broadcast %cst_14 : f32 to vector<128x128xf32>
      %17 = arith.cmpf ogt, %15, %16 : vector<128x128xf32>
      %cst_15 = arith.constant 2.000000e-01 : f32
      %18 = vector.broadcast %cst_15 : f32 to vector<128x128xf32>
      %19 = arith.mulf %18, %15 : vector<128x128xf32>
      %20 = arith.select %17, %15, %19 : vector<128x128xi1>, vector<128x128xf32>
      %c0_16 = arith.constant 0 : index
      %c0_17 = arith.constant 0 : index
      %21 = vector.load %arg6[%c0_16, %c0_17] : memref<1x128xf32, #tpu.memory_space<vmem>>, vector<1x128xf32>
      %22 = vector.broadcast %21 : vector<1x128xf32> to vector<128x128xf32>
      %23 = arith.mulf %20, %22 : vector<128x128xf32>
      %c0_18 = arith.constant 0 : index
      %c0_19 = arith.constant 0 : index
      %24 = vector.load %arg7[%c0_18, %c0_19] : memref<1x128xf32, #tpu.memory_space<vmem>>, vector<1x128xf32>
      %25 = vector.broadcast %24 : vector<1x128xf32> to vector<128x128xf32>
      %26 = arith.addf %23, %25 : vector<128x128xf32>
      %27 = arith.truncf %26 : vector<128x128xf32> to vector<128x128xbf16>
      %c0_20 = arith.constant 0 : index
      %c0_21 = arith.constant 0 : index
      %28 = vector.load %arg8[%c0_20, %c0_21] : memref<128x128xbf16, #tpu.memory_space<vmem>>, vector<128x128xbf16>
      tpu.vector_store %arg8[%c0_20, %c0_21], %27 {strides = array<i32>} : memref<128x128xbf16, #tpu.memory_space<vmem>>, vector<128x128xbf16>,
    } else {
    }
    return
  }
  func.func @transform_0(%arg0: i32, %arg1: i32, %arg2: i32) -> (i32, i32) {
    %c0_i32 = arith.constant 0 : i32
    return %arg0, %arg2 : i32, i32
  }
  func.func @transform_1(%arg0: i32, %arg1: i32, %arg2: i32) -> (i32, i32) {
    %c0_i32 = arith.constant 0 : i32
    return %arg2, %arg1 : i32, i32
  }
  func.func @transform_2(%arg0: i32, %arg1: i32, %arg2: i32) -> (i32, i32) {
    %c0_i32 = arith.constant 0 : i32
    %c0_i32_0 = arith.constant 0 : i32
    return %c0_i32, %arg1 : i32, i32
  }
  func.func @transform_3(%arg0: i32, %arg1: i32, %arg2: i32) -> (i32, i32) {
    %c0_i32 = arith.constant 0 : i32
    %c0_i32_0 = arith.constant 0 : i32
    return %c0_i32, %arg1 : i32, i32
  }
  func.func @transform_4(%arg0: i32, %arg1: i32, %arg2: i32) -> (i32, i32) {
    %c0_i32 = arith.constant 0 : i32
    %c0_i32_0 = arith.constant 0 : i32
    return %c0_i32, %arg1 : i32, i32
  }
  func.func @transform_5(%arg0: i32, %arg1: i32, %arg2: i32) -> (i32, i32) {
    %c0_i32 = arith.constant 0 : i32
    return %arg0, %arg1 : i32, i32
  }
}

module attributes {stable_mosaic.version = 11 : i64} {
  func.func @_fused_gemm_kernel(%arg0: i32, %arg1: i32, %arg2: i32, %arg3: memref<32x256xbf16, #tpu.memory_space<vmem>>, %arg4: memref<256x128xbf16, #tpu.memory_space<vmem>>, %arg5: memref<1x128xf32, #tpu.memory_space<vmem>>, %arg6: memref<1x128xf32, #tpu.memory_space<vmem>>, %arg7: memref<1x128xf32, #tpu.memory_space<vmem>>, %arg8: memref<32x128xbf16, #tpu.memory_space<vmem>>, %arg9: memref<32x128xf32, #tpu.memory_space<vmem>>) attributes {dimension_semantics = [#tpu.dimension_semantics<parallel>, #tpu.dimension_semantics<parallel>, #tpu.dimension_semantics<arbitrary>], iteration_bounds = array<i64: 1, 1, 1>, scalar_prefetch = 0 : i64, scratch_operands = 1 : i64, tpu.core_type = #tpu.core_type<tc>, window_params = [{transform_indices = @transform_0, window_bounds = array<i64: 32, 256>}, {transform_indices = @transform_1, window_bounds = array<i64: 256, 128>}, {transform_indices = @transform_2, window_bounds = array<i64: 1, 128>}, {transform_indices = @transform_3, window_bounds = array<i64: 1, 128>}, {transform_indices = @transform_4, window_bounds = array<i64: 1, 128>}, {transform_indices = @transform_5, window_bounds = array<i64: 32, 128>}]} {
    %c0_i32 = arith.constant 0 : i32
    %0 = arith.cmpi eq, %arg2, %c0_i32 : i32
    %1 = arith.extui %0 : i1 to i32
    %c0_i32_0 = arith.constant 0 : i32
    %2 = arith.cmpi ne, %1, %c0_i32_0 : i32
    scf.if %2 {
      %cst_10 = arith.constant 0.000000e+00 : f32
      %12 = vector.broadcast %cst_10 : f32 to vector<32x128xf32>
      %c0_11 = arith.constant 0 : index
      %c0_12 = arith.constant 0 : index
      %13 = vector.load %arg9[%c0_11, %c0_12] : memref<32x128xf32, #tpu.memory_space<vmem>>, vector<32x128xf32>
      tpu.vector_store %arg9[%c0_11, %c0_12], %12 {strides = array<i32>} : memref<32x128xf32, #tpu.memory_space<vmem>>, vector<32x128xf32>,
    } else {
    }
    %c0 = arith.constant 0 : index
    %c0_1 = arith.constant 0 : index
    %3 = vector.load %arg9[%c0, %c0_1] : memref<32x128xf32, #tpu.memory_space<vmem>>, vector<32x128xf32>
    %c0_2 = arith.constant 0 : index
    %c0_3 = arith.constant 0 : index
    %4 = vector.load %arg3[%c0_2, %c0_3] : memref<32x256xbf16, #tpu.memory_space<vmem>>, vector<32x256xbf16>
    %c0_4 = arith.constant 0 : index
    %c0_5 = arith.constant 0 : index
    %5 = vector.load %arg4[%c0_4, %c0_5] : memref<256x128xbf16, #tpu.memory_space<vmem>>, vector<256x128xbf16>
    %cst = arith.constant dense<0.000000e+00> : vector<32x128xf32>
    %6 = tpu.matmul %4, %5, %cst {dimension_numbers = #tpu.dot_dimension_numbers<[1], [0], [0], [1], [0, 0, 1, 1], [], []>} : vector<32x256xbf16>, vector<256x128xbf16>, vector<32x128xf32> -> vector<32x128xf32>
    %7 = arith.addf %3, %6 : vector<32x128xf32>
    %c0_6 = arith.constant 0 : index
    %c0_7 = arith.constant 0 : index
    %8 = vector.load %arg9[%c0_6, %c0_7] : memref<32x128xf32, #tpu.memory_space<vmem>>, vector<32x128xf32>
    tpu.vector_store %arg9[%c0_6, %c0_7], %7 {strides = array<i32>} : memref<32x128xf32, #tpu.memory_space<vmem>>, vector<32x128xf32>,
    %c0_i32_8 = arith.constant 0 : i32
    %9 = arith.cmpi eq, %arg2, %c0_i32_8 : i32
    %10 = arith.extui %9 : i1 to i32
    %c0_i32_9 = arith.constant 0 : i32
    %11 = arith.cmpi ne, %10, %c0_i32_9 : i32
    scf.if %11 {
      %c0_10 = arith.constant 0 : index
      %c0_11 = arith.constant 0 : index
      %12 = vector.load %arg9[%c0_10, %c0_11] : memref<32x128xf32, #tpu.memory_space<vmem>>, vector<32x128xf32>
      %c0_12 = arith.constant 0 : index
      %c0_13 = arith.constant 0 : index
      %13 = vector.load %arg5[%c0_12, %c0_13] : memref<1x128xf32, #tpu.memory_space<vmem>>, vector<1x128xf32>
      %14 = vector.broadcast %13 : vector<1x128xf32> to vector<32x128xf32>
      %15 = arith.addf %12, %14 : vector<32x128xf32>
      %cst_14 = arith.constant 0.000000e+00 : f32
      %16 = vector.broadcast %cst_14 : f32 to vector<32x128xf32>
      %17 = arith.cmpf ogt, %15, %16 : vector<32x128xf32>
      %cst_15 = arith.constant 2.000000e-01 : f32
      %18 = vector.broadcast %cst_15 : f32 to vector<32x128xf32>
      %19 = arith.mulf %18, %15 : vector<32x128xf32>
      %20 = arith.select %17, %15, %19 : vector<32x128xi1>, vector<32x128xf32>
      %c0_16 = arith.constant 0 : index
      %c0_17 = arith.constant 0 : index
      %21 = vector.load %arg6[%c0_16, %c0_17] : memref<1x128xf32, #tpu.memory_space<vmem>>, vector<1x128xf32>
      %22 = vector.broadcast %21 : vector<1x128xf32> to vector<32x128xf32>
      %23 = arith.mulf %20, %22 : vector<32x128xf32>
      %c0_18 = arith.constant 0 : index
      %c0_19 = arith.constant 0 : index
      %24 = vector.load %arg7[%c0_18, %c0_19] : memref<1x128xf32, #tpu.memory_space<vmem>>, vector<1x128xf32>
      %25 = vector.broadcast %24 : vector<1x128xf32> to vector<32x128xf32>
      %26 = arith.addf %23, %25 : vector<32x128xf32>
      %27 = arith.truncf %26 : vector<32x128xf32> to vector<32x128xbf16>
      %c0_20 = arith.constant 0 : index
      %c0_21 = arith.constant 0 : index
      %28 = vector.load %arg8[%c0_20, %c0_21] : memref<32x128xbf16, #tpu.memory_space<vmem>>, vector<32x128xbf16>
      tpu.vector_store %arg8[%c0_20, %c0_21], %27 {strides = array<i32>} : memref<32x128xbf16, #tpu.memory_space<vmem>>, vector<32x128xbf16>,
    } else {
    }
    return
  }
  func.func @transform_0(%arg0: i32, %arg1: i32, %arg2: i32) -> (i32, i32) {
    %c0_i32 = arith.constant 0 : i32
    return %arg0, %arg2 : i32, i32
  }
  func.func @transform_1(%arg0: i32, %arg1: i32, %arg2: i32) -> (i32, i32) {
    %c0_i32 = arith.constant 0 : i32
    return %arg2, %arg1 : i32, i32
  }
  func.func @transform_2(%arg0: i32, %arg1: i32, %arg2: i32) -> (i32, i32) {
    %c0_i32 = arith.constant 0 : i32
    %c0_i32_0 = arith.constant 0 : i32
    return %c0_i32, %arg1 : i32, i32
  }
  func.func @transform_3(%arg0: i32, %arg1: i32, %arg2: i32) -> (i32, i32) {
    %c0_i32 = arith.constant 0 : i32
    %c0_i32_0 = arith.constant 0 : i32
    return %c0_i32, %arg1 : i32, i32
  }
  func.func @transform_4(%arg0: i32, %arg1: i32, %arg2: i32) -> (i32, i32) {
    %c0_i32 = arith.constant 0 : i32
    %c0_i32_0 = arith.constant 0 : i32
    return %c0_i32, %arg1 : i32, i32
  }
  func.func @transform_5(%arg0: i32, %arg1: i32, %arg2: i32) -> (i32, i32) {
    %c0_i32 = arith.constant 0 : i32
    return %arg0, %arg1 : i32, i32
  }
}

module attributes {stable_mosaic.version = 11 : i64} {
  func.func @_fused_gemm_kernel(%arg0: i32, %arg1: i32, %arg2: i32, %arg3: memref<8x384xbf16, #tpu.memory_space<vmem>>, %arg4: memref<384x128xbf16, #tpu.memory_space<vmem>>, %arg5: memref<1x128xf32, #tpu.memory_space<vmem>>, %arg6: memref<1x128xf32, #tpu.memory_space<vmem>>, %arg7: memref<1x128xf32, #tpu.memory_space<vmem>>, %arg8: memref<8x128xbf16, #tpu.memory_space<vmem>>, %arg9: memref<8x128xf32, #tpu.memory_space<vmem>>) attributes {dimension_semantics = [#tpu.dimension_semantics<parallel>, #tpu.dimension_semantics<parallel>, #tpu.dimension_semantics<arbitrary>], iteration_bounds = array<i64: 1, 1, 1>, scalar_prefetch = 0 : i64, scratch_operands = 1 : i64, tpu.core_type = #tpu.core_type<tc>, window_params = [{transform_indices = @transform_0, window_bounds = array<i64: 8, 384>}, {transform_indices = @transform_1, window_bounds = array<i64: 384, 128>}, {transform_indices = @transform_2, window_bounds = array<i64: 1, 128>}, {transform_indices = @transform_3, window_bounds = array<i64: 1, 128>}, {transform_indices = @transform_4, window_bounds = array<i64: 1, 128>}, {transform_indices = @transform_5, window_bounds = array<i64: 8, 128>}]} {
    %c0_i32 = arith.constant 0 : i32
    %0 = arith.cmpi eq, %arg2, %c0_i32 : i32
    %1 = arith.extui %0 : i1 to i32
    %c0_i32_0 = arith.constant 0 : i32
    %2 = arith.cmpi ne, %1, %c0_i32_0 : i32
    scf.if %2 {
      %cst_10 = arith.constant 0.000000e+00 : f32
      %12 = vector.broadcast %cst_10 : f32 to vector<8x128xf32>
      %c0_11 = arith.constant 0 : index
      %c0_12 = arith.constant 0 : index
      %13 = vector.load %arg9[%c0_11, %c0_12] : memref<8x128xf32, #tpu.memory_space<vmem>>, vector<8x128xf32>
      tpu.vector_store %arg9[%c0_11, %c0_12], %12 {strides = array<i32>} : memref<8x128xf32, #tpu.memory_space<vmem>>, vector<8x128xf32>,
    } else {
    }
    %c0 = arith.constant 0 : index
    %c0_1 = arith.constant 0 : index
    %3 = vector.load %arg9[%c0, %c0_1] : memref<8x128xf32, #tpu.memory_space<vmem>>, vector<8x128xf32>
    %c0_2 = arith.constant 0 : index
    %c0_3 = arith.constant 0 : index
    %4 = vector.load %arg3[%c0_2, %c0_3] : memref<8x384xbf16, #tpu.memory_space<vmem>>, vector<8x384xbf16>
    %c0_4 = arith.constant 0 : index
    %c0_5 = arith.constant 0 : index
    %5 = vector.load %arg4[%c0_4, %c0_5] : memref<384x128xbf16, #tpu.memory_space<vmem>>, vector<384x128xbf16>
    %cst = arith.constant dense<0.000000e+00> : vector<8x128xf32>
    %6 = tpu.matmul %4, %5, %cst {dimension_numbers = #tpu.dot_dimension_numbers<[1], [0], [0], [1], [0, 0, 1, 1], [], []>} : vector<8x384xbf16>, vector<384x128xbf16>, vector<8x128xf32> -> vector<8x128xf32>
    %7 = arith.addf %3, %6 : vector<8x128xf32>
    %c0_6 = arith.constant 0 : index
    %c0_7 = arith.constant 0 : index
    %8 = vector.load %arg9[%c0_6, %c0_7] : memref<8x128xf32, #tpu.memory_space<vmem>>, vector<8x128xf32>
    tpu.vector_store %arg9[%c0_6, %c0_7], %7 {strides = array<i32>} : memref<8x128xf32, #tpu.memory_space<vmem>>, vector<8x128xf32>,
    %c0_i32_8 = arith.constant 0 : i32
    %9 = arith.cmpi eq, %arg2, %c0_i32_8 : i32
    %10 = arith.extui %9 : i1 to i32
    %c0_i32_9 = arith.constant 0 : i32
    %11 = arith.cmpi ne, %10, %c0_i32_9 : i32
    scf.if %11 {
      %c0_10 = arith.constant 0 : index
      %c0_11 = arith.constant 0 : index
      %12 = vector.load %arg9[%c0_10, %c0_11] : memref<8x128xf32, #tpu.memory_space<vmem>>, vector<8x128xf32>
      %c0_12 = arith.constant 0 : index
      %c0_13 = arith.constant 0 : index
      %13 = vector.load %arg5[%c0_12, %c0_13] : memref<1x128xf32, #tpu.memory_space<vmem>>, vector<1x128xf32>
      %14 = vector.broadcast %13 : vector<1x128xf32> to vector<8x128xf32>
      %15 = arith.addf %12, %14 : vector<8x128xf32>
      %cst_14 = arith.constant 0.000000e+00 : f32
      %16 = vector.broadcast %cst_14 : f32 to vector<8x128xf32>
      %17 = arith.cmpf ogt, %15, %16 : vector<8x128xf32>
      %cst_15 = arith.constant 2.000000e-01 : f32
      %18 = vector.broadcast %cst_15 : f32 to vector<8x128xf32>
      %19 = arith.mulf %18, %15 : vector<8x128xf32>
      %20 = arith.select %17, %15, %19 : vector<8x128xi1>, vector<8x128xf32>
      %c0_16 = arith.constant 0 : index
      %c0_17 = arith.constant 0 : index
      %21 = vector.load %arg6[%c0_16, %c0_17] : memref<1x128xf32, #tpu.memory_space<vmem>>, vector<1x128xf32>
      %22 = vector.broadcast %21 : vector<1x128xf32> to vector<8x128xf32>
      %23 = arith.mulf %20, %22 : vector<8x128xf32>
      %c0_18 = arith.constant 0 : index
      %c0_19 = arith.constant 0 : index
      %24 = vector.load %arg7[%c0_18, %c0_19] : memref<1x128xf32, #tpu.memory_space<vmem>>, vector<1x128xf32>
      %25 = vector.broadcast %24 : vector<1x128xf32> to vector<8x128xf32>
      %26 = arith.addf %23, %25 : vector<8x128xf32>
      %27 = arith.truncf %26 : vector<8x128xf32> to vector<8x128xbf16>
      %c0_20 = arith.constant 0 : index
      %c0_21 = arith.constant 0 : index
      %28 = vector.load %arg8[%c0_20, %c0_21] : memref<8x128xbf16, #tpu.memory_space<vmem>>, vector<8x128xbf16>
      tpu.vector_store %arg8[%c0_20, %c0_21], %27 {strides = array<i32>} : memref<8x128xbf16, #tpu.memory_space<vmem>>, vector<8x128xbf16>,
    } else {
    }
    return
  }
  func.func @transform_0(%arg0: i32, %arg1: i32, %arg2: i32) -> (i32, i32) {
    %c0_i32 = arith.constant 0 : i32
    return %arg0, %arg2 : i32, i32
  }
  func.func @transform_1(%arg0: i32, %arg1: i32, %arg2: i32) -> (i32, i32) {
    %c0_i32 = arith.constant 0 : i32
    return %arg2, %arg1 : i32, i32
  }
  func.func @transform_2(%arg0: i32, %arg1: i32, %arg2: i32) -> (i32, i32) {
    %c0_i32 = arith.constant 0 : i32
    %c0_i32_0 = arith.constant 0 : i32
    return %c0_i32, %arg1 : i32, i32
  }
  func.func @transform_3(%arg0: i32, %arg1: i32, %arg2: i32) -> (i32, i32) {
    %c0_i32 = arith.constant 0 : i32
    %c0_i32_0 = arith.constant 0 : i32
    return %c0_i32, %arg1 : i32, i32
  }
  func.func @transform_4(%arg0: i32, %arg1: i32, %arg2: i32) -> (i32, i32) {
    %c0_i32 = arith.constant 0 : i32
    %c0_i32_0 = arith.constant 0 : i32
    return %c0_i32, %arg1 : i32, i32
  }
  func.func @transform_5(%arg0: i32, %arg1: i32, %arg2: i32) -> (i32, i32) {
    %c0_i32 = arith.constant 0 : i32
    return %arg0, %arg1 : i32, i32
  }
}

module attributes {stable_mosaic.version = 11 : i64} {
  func.func @_fused_gemm_kernel(%arg0: i32, %arg1: i32, %arg2: i32, %arg3: memref<8x128xbf16, #tpu.memory_space<vmem>>, %arg4: memref<128x128xbf16, #tpu.memory_space<vmem>>, %arg5: memref<1x128xf32, #tpu.memory_space<vmem>>, %arg6: memref<1x128xf32, #tpu.memory_space<vmem>>, %arg7: memref<1x128xf32, #tpu.memory_space<vmem>>, %arg8: memref<8x128xbf16, #tpu.memory_space<vmem>>, %arg9: memref<8x128xf32, #tpu.memory_space<vmem>>) attributes {dimension_semantics = [#tpu.dimension_semantics<parallel>, #tpu.dimension_semantics<parallel>, #tpu.dimension_semantics<arbitrary>], iteration_bounds = array<i64: 1, 1, 5>, scalar_prefetch = 0 : i64, scratch_operands = 1 : i64, tpu.core_type = #tpu.core_type<tc>, window_params = [{transform_indices = @transform_0, window_bounds = array<i64: 8, 128>}, {transform_indices = @transform_1, window_bounds = array<i64: 128, 128>}, {transform_indices = @transform_2, window_bounds = array<i64: 1, 128>}, {transform_indices = @transform_3, window_bounds = array<i64: 1, 128>}, {transform_indices = @transform_4, window_bounds = array<i64: 1, 128>}, {transform_indices = @transform_5, window_bounds = array<i64: 8, 128>}]} {
    %c0_i32 = arith.constant 0 : i32
    %0 = arith.cmpi eq, %arg2, %c0_i32 : i32
    %1 = arith.extui %0 : i1 to i32
    %c0_i32_0 = arith.constant 0 : i32
    %2 = arith.cmpi ne, %1, %c0_i32_0 : i32
    scf.if %2 {
      %cst_9 = arith.constant 0.000000e+00 : f32
      %12 = vector.broadcast %cst_9 : f32 to vector<8x128xf32>
      %c0_10 = arith.constant 0 : index
      %c0_11 = arith.constant 0 : index
      %13 = vector.load %arg9[%c0_10, %c0_11] : memref<8x128xf32, #tpu.memory_space<vmem>>, vector<8x128xf32>
      tpu.vector_store %arg9[%c0_10, %c0_11], %12 {strides = array<i32>} : memref<8x128xf32, #tpu.memory_space<vmem>>, vector<8x128xf32>,
    } else {
    }
    %c0 = arith.constant 0 : index
    %c0_1 = arith.constant 0 : index
    %3 = vector.load %arg9[%c0, %c0_1] : memref<8x128xf32, #tpu.memory_space<vmem>>, vector<8x128xf32>
    %c0_2 = arith.constant 0 : index
    %c0_3 = arith.constant 0 : index
    %4 = vector.load %arg3[%c0_2, %c0_3] : memref<8x128xbf16, #tpu.memory_space<vmem>>, vector<8x128xbf16>
    %c0_4 = arith.constant 0 : index
    %c0_5 = arith.constant 0 : index
    %5 = vector.load %arg4[%c0_4, %c0_5] : memref<128x128xbf16, #tpu.memory_space<vmem>>, vector<128x128xbf16>
    %cst = arith.constant dense<0.000000e+00> : vector<8x128xf32>
    %6 = tpu.matmul %4, %5, %cst {dimension_numbers = #tpu.dot_dimension_numbers<[1], [0], [0], [1], [0, 0, 1, 1], [], []>} : vector<8x128xbf16>, vector<128x128xbf16>, vector<8x128xf32> -> vector<8x128xf32>
    %7 = arith.addf %3, %6 : vector<8x128xf32>
    %c0_6 = arith.constant 0 : index
    %c0_7 = arith.constant 0 : index
    %8 = vector.load %arg9[%c0_6, %c0_7] : memref<8x128xf32, #tpu.memory_space<vmem>>, vector<8x128xf32>
    tpu.vector_store %arg9[%c0_6, %c0_7], %7 {strides = array<i32>} : memref<8x128xf32, #tpu.memory_space<vmem>>, vector<8x128xf32>,
    %c4_i32 = arith.constant 4 : i32
    %9 = arith.cmpi eq, %arg2, %c4_i32 : i32
    %10 = arith.extui %9 : i1 to i32
    %c0_i32_8 = arith.constant 0 : i32
    %11 = arith.cmpi ne, %10, %c0_i32_8 : i32
    scf.if %11 {
      %c0_9 = arith.constant 0 : index
      %c0_10 = arith.constant 0 : index
      %12 = vector.load %arg9[%c0_9, %c0_10] : memref<8x128xf32, #tpu.memory_space<vmem>>, vector<8x128xf32>
      %c0_11 = arith.constant 0 : index
      %c0_12 = arith.constant 0 : index
      %13 = vector.load %arg5[%c0_11, %c0_12] : memref<1x128xf32, #tpu.memory_space<vmem>>, vector<1x128xf32>
      %14 = vector.broadcast %13 : vector<1x128xf32> to vector<8x128xf32>
      %15 = arith.addf %12, %14 : vector<8x128xf32>
      %cst_13 = arith.constant 0.000000e+00 : f32
      %16 = vector.broadcast %cst_13 : f32 to vector<8x128xf32>
      %17 = arith.cmpf ogt, %15, %16 : vector<8x128xf32>
      %cst_14 = arith.constant 2.000000e-01 : f32
      %18 = vector.broadcast %cst_14 : f32 to vector<8x128xf32>
      %19 = arith.mulf %18, %15 : vector<8x128xf32>
      %20 = arith.select %17, %15, %19 : vector<8x128xi1>, vector<8x128xf32>
      %c0_15 = arith.constant 0 : index
      %c0_16 = arith.constant 0 : index
      %21 = vector.load %arg6[%c0_15, %c0_16] : memref<1x128xf32, #tpu.memory_space<vmem>>, vector<1x128xf32>
      %22 = vector.broadcast %21 : vector<1x128xf32> to vector<8x128xf32>
      %23 = arith.mulf %20, %22 : vector<8x128xf32>
      %c0_17 = arith.constant 0 : index
      %c0_18 = arith.constant 0 : index
      %24 = vector.load %arg7[%c0_17, %c0_18] : memref<1x128xf32, #tpu.memory_space<vmem>>, vector<1x128xf32>
      %25 = vector.broadcast %24 : vector<1x128xf32> to vector<8x128xf32>
      %26 = arith.addf %23, %25 : vector<8x128xf32>
      %27 = arith.truncf %26 : vector<8x128xf32> to vector<8x128xbf16>
      %c0_19 = arith.constant 0 : index
      %c0_20 = arith.constant 0 : index
      %28 = vector.load %arg8[%c0_19, %c0_20] : memref<8x128xbf16, #tpu.memory_space<vmem>>, vector<8x128xbf16>
      tpu.vector_store %arg8[%c0_19, %c0_20], %27 {strides = array<i32>} : memref<8x128xbf16, #tpu.memory_space<vmem>>, vector<8x128xbf16>,
    } else {
    }
    return
  }
  func.func @transform_0(%arg0: i32, %arg1: i32, %arg2: i32) -> (i32, i32) {
    %c0_i32 = arith.constant 0 : i32
    return %arg0, %arg2 : i32, i32
  }
  func.func @transform_1(%arg0: i32, %arg1: i32, %arg2: i32) -> (i32, i32) {
    %c0_i32 = arith.constant 0 : i32
    return %arg2, %arg1 : i32, i32
  }
  func.func @transform_2(%arg0: i32, %arg1: i32, %arg2: i32) -> (i32, i32) {
    %c0_i32 = arith.constant 0 : i32
    %c0_i32_0 = arith.constant 0 : i32
    return %c0_i32, %arg1 : i32, i32
  }
  func.func @transform_3(%arg0: i32, %arg1: i32, %arg2: i32) -> (i32, i32) {
    %c0_i32 = arith.constant 0 : i32
    %c0_i32_0 = arith.constant 0 : i32
    return %c0_i32, %arg1 : i32, i32
  }
  func.func @transform_4(%arg0: i32, %arg1: i32, %arg2: i32) -> (i32, i32) {
    %c0_i32 = arith.constant 0 : i32
    %c0_i32_0 = arith.constant 0 : i32
    return %c0_i32, %arg1 : i32, i32
  }
  func.func @transform_5(%arg0: i32, %arg1: i32, %arg2: i32) -> (i32, i32) {
    %c0_i32 = arith.constant 0 : i32
    return %arg0, %arg1 : i32, i32
  }
}

module attributes {stable_mosaic.version = 11 : i64} {
  func.func @_fused_gemm_kernel(%arg0: i32, %arg1: i32, %arg2: i32, %arg3: memref<8x128xbf16, #tpu.memory_space<vmem>>, %arg4: memref<128x128xbf16, #tpu.memory_space<vmem>>, %arg5: memref<1x128xf32, #tpu.memory_space<vmem>>, %arg6: memref<1x128xf32, #tpu.memory_space<vmem>>, %arg7: memref<1x128xf32, #tpu.memory_space<vmem>>, %arg8: memref<8x128xf32, #tpu.memory_space<vmem>>, %arg9: memref<8x128xf32, #tpu.memory_space<vmem>>) attributes {dimension_semantics = [#tpu.dimension_semantics<parallel>, #tpu.dimension_semantics<parallel>, #tpu.dimension_semantics<arbitrary>], iteration_bounds = array<i64: 1, 1, 1>, scalar_prefetch = 0 : i64, scratch_operands = 1 : i64, tpu.core_type = #tpu.core_type<tc>, window_params = [{transform_indices = @transform_0, window_bounds = array<i64: 8, 128>}, {transform_indices = @transform_1, window_bounds = array<i64: 128, 128>}, {transform_indices = @transform_2, window_bounds = array<i64: 1, 128>}, {transform_indices = @transform_3, window_bounds = array<i64: 1, 128>}, {transform_indices = @transform_4, window_bounds = array<i64: 1, 128>}, {transform_indices = @transform_5, window_bounds = array<i64: 8, 128>}]} {
    %c0_i32 = arith.constant 0 : i32
    %0 = arith.cmpi eq, %arg2, %c0_i32 : i32
    %1 = arith.extui %0 : i1 to i32
    %c0_i32_0 = arith.constant 0 : i32
    %2 = arith.cmpi ne, %1, %c0_i32_0 : i32
    scf.if %2 {
      %cst_10 = arith.constant 0.000000e+00 : f32
      %12 = vector.broadcast %cst_10 : f32 to vector<8x128xf32>
      %c0_11 = arith.constant 0 : index
      %c0_12 = arith.constant 0 : index
      %13 = vector.load %arg9[%c0_11, %c0_12] : memref<8x128xf32, #tpu.memory_space<vmem>>, vector<8x128xf32>
      tpu.vector_store %arg9[%c0_11, %c0_12], %12 {strides = array<i32>} : memref<8x128xf32, #tpu.memory_space<vmem>>, vector<8x128xf32>,
    } else {
    }
    %c0 = arith.constant 0 : index
    %c0_1 = arith.constant 0 : index
    %3 = vector.load %arg9[%c0, %c0_1] : memref<8x128xf32, #tpu.memory_space<vmem>>, vector<8x128xf32>
    %c0_2 = arith.constant 0 : index
    %c0_3 = arith.constant 0 : index
    %4 = vector.load %arg3[%c0_2, %c0_3] : memref<8x128xbf16, #tpu.memory_space<vmem>>, vector<8x128xbf16>
    %c0_4 = arith.constant 0 : index
    %c0_5 = arith.constant 0 : index
    %5 = vector.load %arg4[%c0_4, %c0_5] : memref<128x128xbf16, #tpu.memory_space<vmem>>, vector<128x128xbf16>
    %cst = arith.constant dense<0.000000e+00> : vector<8x128xf32>
    %6 = tpu.matmul %4, %5, %cst {dimension_numbers = #tpu.dot_dimension_numbers<[1], [0], [0], [1], [0, 0, 1, 1], [], []>} : vector<8x128xbf16>, vector<128x128xbf16>, vector<8x128xf32> -> vector<8x128xf32>
    %7 = arith.addf %3, %6 : vector<8x128xf32>
    %c0_6 = arith.constant 0 : index
    %c0_7 = arith.constant 0 : index
    %8 = vector.load %arg9[%c0_6, %c0_7] : memref<8x128xf32, #tpu.memory_space<vmem>>, vector<8x128xf32>
    tpu.vector_store %arg9[%c0_6, %c0_7], %7 {strides = array<i32>} : memref<8x128xf32, #tpu.memory_space<vmem>>, vector<8x128xf32>,
    %c0_i32_8 = arith.constant 0 : i32
    %9 = arith.cmpi eq, %arg2, %c0_i32_8 : i32
    %10 = arith.extui %9 : i1 to i32
    %c0_i32_9 = arith.constant 0 : i32
    %11 = arith.cmpi ne, %10, %c0_i32_9 : i32
    scf.if %11 {
      %c0_10 = arith.constant 0 : index
      %c0_11 = arith.constant 0 : index
      %12 = vector.load %arg9[%c0_10, %c0_11] : memref<8x128xf32, #tpu.memory_space<vmem>>, vector<8x128xf32>
      %c0_12 = arith.constant 0 : index
      %c0_13 = arith.constant 0 : index
      %13 = vector.load %arg5[%c0_12, %c0_13] : memref<1x128xf32, #tpu.memory_space<vmem>>, vector<1x128xf32>
      %14 = vector.broadcast %13 : vector<1x128xf32> to vector<8x128xf32>
      %15 = arith.addf %12, %14 : vector<8x128xf32>
      %c0_14 = arith.constant 0 : index
      %c0_15 = arith.constant 0 : index
      %16 = vector.load %arg6[%c0_14, %c0_15] : memref<1x128xf32, #tpu.memory_space<vmem>>, vector<1x128xf32>
      %17 = vector.broadcast %16 : vector<1x128xf32> to vector<8x128xf32>
      %18 = arith.mulf %15, %17 : vector<8x128xf32>
      %c0_16 = arith.constant 0 : index
      %c0_17 = arith.constant 0 : index
      %19 = vector.load %arg7[%c0_16, %c0_17] : memref<1x128xf32, #tpu.memory_space<vmem>>, vector<1x128xf32>
      %20 = vector.broadcast %19 : vector<1x128xf32> to vector<8x128xf32>
      %21 = arith.addf %18, %20 : vector<8x128xf32>
      %c0_18 = arith.constant 0 : index
      %c0_19 = arith.constant 0 : index
      %22 = vector.load %arg8[%c0_18, %c0_19] : memref<8x128xf32, #tpu.memory_space<vmem>>, vector<8x128xf32>
      tpu.vector_store %arg8[%c0_18, %c0_19], %21 {strides = array<i32>} : memref<8x128xf32, #tpu.memory_space<vmem>>, vector<8x128xf32>,
    } else {
    }
    return
  }
  func.func @transform_0(%arg0: i32, %arg1: i32, %arg2: i32) -> (i32, i32) {
    %c0_i32 = arith.constant 0 : i32
    return %arg0, %arg2 : i32, i32
  }
  func.func @transform_1(%arg0: i32, %arg1: i32, %arg2: i32) -> (i32, i32) {
    %c0_i32 = arith.constant 0 : i32
    return %arg2, %arg1 : i32, i32
  }
  func.func @transform_2(%arg0: i32, %arg1: i32, %arg2: i32) -> (i32, i32) {
    %c0_i32 = arith.constant 0 : i32
    %c0_i32_0 = arith.constant 0 : i32
    return %c0_i32, %arg1 : i32, i32
  }
  func.func @transform_3(%arg0: i32, %arg1: i32, %arg2: i32) -> (i32, i32) {
    %c0_i32 = arith.constant 0 : i32
    %c0_i32_0 = arith.constant 0 : i32
    return %c0_i32, %arg1 : i32, i32
  }
  func.func @transform_4(%arg0: i32, %arg1: i32, %arg2: i32) -> (i32, i32) {
    %c0_i32 = arith.constant 0 : i32
    %c0_i32_0 = arith.constant 0 : i32
    return %c0_i32, %arg1 : i32, i32
  }
  func.func @transform_5(%arg0: i32, %arg1: i32, %arg2: i32) -> (i32, i32) {
    %c0_i32 = arith.constant 0 : i32
    return %arg0, %arg1 : i32, i32
  }
}

</mosaic_0001>

<llo_original>
// kernel: encoder_forward.5
$region0: #{encoder_forward.5}
  #allocation0 [shape = 'u32[]', space=smem, size = 0x4, offset = 0x4, fixed_abs, tag = 'smem constant byte address 0x4 - core index']
  #allocation1 [shape = 'u32[144,128]{1,0:T(1,128)}', space=vmem, size = 0x12000, scoped, tag = 'internal scratch']
  #allocation2 [shape = 'f32[128,128]{1,0:T(8,128)}', space=vmem, size = 0x10000, scoped, tag = 'scratch operand']
  %s0 = inlined_call_operand.vmem [shape: bf16[128,128], index: 0, kind: input, shape index: {}]
  %s1 = inlined_call_operand.vmem [shape: bf16[128,128], index: 1, kind: input, shape index: {}]
  %s2 = inlined_call_operand.vmem [shape: f32[1,128], index: 2, kind: input, shape index: {}]
  %s3 = inlined_call_operand.vmem [shape: f32[1,128], index: 3, kind: input, shape index: {}]
  %s4 = inlined_call_operand.vmem [shape: f32[1,128], index: 4, kind: input, shape index: {}]
  %s5 = inlined_call_operand.vmem [shape: bf16[128,128], index: 5, kind: output, shape index: {}]
  %s6 = sld [smem:[#allocation0]]
  $region38: #{encoder_forward.5} parent=0
    _
  %s8 = ssub.s32 1, %s6
  %s9 = scalar_select 0, %s8, %s6
  // Predicated region
  $region2: #{encoder_forward.5} parent=0 // pred_check
    _
  $region3: #{encoder_forward.5} parent=0 // pred_check_branch
    %11 = sbr.rel (0) target = $region5
  $region4: #{encoder_forward.5} parent=0 // pred_region
    _
  $region5: #{encoder_forward.5} parent=0 // pred_fallthru
    _
  // Predicated region
  $region6: #{encoder_forward.5} parent=0 // pred_check
    _
  $region7: #{encoder_forward.5} parent=0 // pred_check_branch
    %13 = sbr.rel (0) target = $region9
  $region8: #{encoder_forward.5} parent=0 // pred_region
    _
  $region9: #{encoder_forward.5} parent=0 // pred_fallthru
    _
  // Predicated region
  $region10: #{encoder_forward.5} parent=0 // pred_check
    _
  $region11: #{encoder_forward.5} parent=0 // pred_check_branch
    %15 = sbr.rel (0) target = $region13
  $region12: #{encoder_forward.5} parent=0 // pred_region
    _
  $region13: #{encoder_forward.5} parent=0 // pred_fallthru
    _
  // Predicated region
  $region14: #{encoder_forward.5} parent=0 // pred_check
    _
  $region15: #{encoder_forward.5} parent=0 // pred_check_branch
    %17 = sbr.rel (0) target = $region17
  $region16: #{encoder_forward.5} parent=0 // pred_region
    _
  $region17: #{encoder_forward.5} parent=0 // pred_fallthru
    _
  // Predicated region
  $region18: #{encoder_forward.5} parent=0 // pred_check
    _
  $region19: #{encoder_forward.5} parent=0 // pred_check_branch
    %19 = sbr.rel (0) target = $region21
  $region20: #{encoder_forward.5} parent=0 // pred_region
    _
  $region21: #{encoder_forward.5} parent=0 // pred_fallthru
    _
  %p21 = scmp.eq.s32.totalorder 0, 0
  // Predicated region
  $region22: #{encoder_forward.5} parent=0 // pred_check
    %p22 = pneg %p21
  $region23: #{encoder_forward.5} parent=0 // pred_check_branch
    %24 = sbr.rel (%p22) target = $region25
  $region24: #{encoder_forward.5} parent=0 // pred_region
    %25 = vst [vmem:[#allocation2] sm:$0xff] 0.0
    %26 = vst [vmem:[#allocation2 + $0x8] sm:$0xff] 0.0
    %27 = vst [vmem:[#allocation2 + $0x10] sm:$0xff] 0.0
    %28 = vst [vmem:[#allocation2 + $0x18] sm:$0xff] 0.0
    %29 = vst [vmem:[#allocation2 + $0x20] sm:$0xff] 0.0
    %30 = vst [vmem:[#allocation2 + $0x28] sm:$0xff] 0.0
    %31 = vst [vmem:[#allocation2 + $0x30] sm:$0xff] 0.0
    %32 = vst [vmem:[#allocation2 + $0x38] sm:$0xff] 0.0
    %33 = vst [vmem:[#allocation2 + $0x40] sm:$0xff] 0.0
    %34 = vst [vmem:[#allocation2 + $0x48] sm:$0xff] 0.0
    %35 = vst [vmem:[#allocation2 + $0x50] sm:$0xff] 0.0
    %36 = vst [vmem:[#allocation2 + $0x58] sm:$0xff] 0.0
    %37 = vst [vmem:[#allocation2 + $0x60] sm:$0xff] 0.0
    %38 = vst [vmem:[#allocation2 + $0x68] sm:$0xff] 0.0
    %39 = vst [vmem:[#allocation2 + $0x70] sm:$0xff] 0.0
    %40 = vst [vmem:[#allocation2 + $0x78] sm:$0xff] 0.0
  $region25: #{encoder_forward.5} parent=0 // pred_fallthru
    _
  %v41 = vld [vmem:[#allocation2] sm:$0xff]
  %v42 = vld [vmem:[#allocation2 + $0x8] sm:$0xff]
  %v43 = vld [vmem:[#allocation2 + $0x10] sm:$0xff]
  %v44 = vld [vmem:[#allocation2 + $0x18] sm:$0xff]
  %v45 = vld [vmem:[#allocation2 + $0x20] sm:$0xff]
  %v46 = vld [vmem:[#allocation2 + $0x28] sm:$0xff]
  %v47 = vld [vmem:[#allocation2 + $0x30] sm:$0xff]
  %v48 = vld [vmem:[#allocation2 + $0x38] sm:$0xff]
  %v49 = vld [vmem:[#allocation2 + $0x40] sm:$0xff]
  %v50 = vld [vmem:[#allocation2 + $0x48] sm:$0xff]
  %v51 = vld [vmem:[#allocation2 + $0x50] sm:$0xff]
  %v52 = vld [vmem:[#allocation2 + $0x58] sm:$0xff]
  %v53 = vld [vmem:[#allocation2 + $0x60] sm:$0xff]
  %v54 = vld [vmem:[#allocation2 + $0x68] sm:$0xff]
  %v55 = vld [vmem:[#allocation2 + $0x70] sm:$0xff]
  %v56 = vld [vmem:[#allocation2 + $0x78] sm:$0xff]
  %v57 = vld [vmem:[%s0] sm:$0xf]
  %v58 = vld [vmem:[%s0 + $0x4] sm:$0xf]
  %v59 = vld [vmem:[%s0 + $0x8] sm:$0xf]
  %v60 = vld [vmem:[%s0 + $0xc] sm:$0xf]
  %v61 = vld [vmem:[%s0 + $0x10] sm:$0xf]
  %v62 = vld [vmem:[%s0 + $0x14] sm:$0xf]
  %v63 = vld [vmem:[%s0 + $0x18] sm:$0xf]
  %v64 = vld [vmem:[%s0 + $0x1c] sm:$0xf]
  %v65 = vld [vmem:[%s0 + $0x20] sm:$0xf]
  %v66 = vld [vmem:[%s0 + $0x24] sm:$0xf]
  %v67 = vld [vmem:[%s0 + $0x28] sm:$0xf]
  %v68 = vld [vmem:[%s0 + $0x2c] sm:$0xf]
  %v69 = vld [vmem:[%s0 + $0x30] sm:$0xf]
  %v70 = vld [vmem:[%s0 + $0x34] sm:$0xf]
  %v71 = vld [vmem:[%s0 + $0x38] sm:$0xf]
  %v72 = vld [vmem:[%s0 + $0x3c] sm:$0xf]
  %v73 = vld [vmem:[%s1] sm:$0xf]
  %v74 = vld [vmem:[%s1 + $0x4] sm:$0xf]
  %v75 = vld [vmem:[%s1 + $0x8] sm:$0xf]
  %v76 = vld [vmem:[%s1 + $0xc] sm:$0xf]
  %v77 = vld [vmem:[%s1 + $0x10] sm:$0xf]
  %v78 = vld [vmem:[%s1 + $0x14] sm:$0xf]
  %v79 = vld [vmem:[%s1 + $0x18] sm:$0xf]
  %v80 = vld [vmem:[%s1 + $0x1c] sm:$0xf]
  %v81 = vld [vmem:[%s1 + $0x20] sm:$0xf]
  %v82 = vld [vmem:[%s1 + $0x24] sm:$0xf]
  %v83 = vld [vmem:[%s1 + $0x28] sm:$0xf]
  %v84 = vld [vmem:[%s1 + $0x2c] sm:$0xf]
  %v85 = vld [vmem:[%s1 + $0x30] sm:$0xf]
  %v86 = vld [vmem:[%s1 + $0x34] sm:$0xf]
  %v87 = vld [vmem:[%s1 + $0x38] sm:$0xf]
  %v88 = vld [vmem:[%s1 + $0x3c] sm:$0xf]
  %v105 = vunpack.c.l.b16 %v57
  %v106 = vunpack.c.l.b16 %v58
  %v107 = vunpack.c.l.b16 %v59
  %v108 = vunpack.c.l.b16 %v60
  %v109 = vunpack.c.l.b16 %v61
  %v110 = vunpack.c.l.b16 %v62
  %v111 = vunpack.c.l.b16 %v63
  %v112 = vunpack.c.l.b16 %v64
  %v113 = vunpack.c.l.b16 %v65
  %v114 = vunpack.c.l.b16 %v66
  %v115 = vunpack.c.l.b16 %v67
  %v116 = vunpack.c.l.b16 %v68
  %v117 = vunpack.c.l.b16 %v69
  %v118 = vunpack.c.l.b16 %v70
  %v119 = vunpack.c.l.b16 %v71
  %v120 = vunpack.c.l.b16 %v72
  %v121 = vpack.c.b16 %v106, %v105
  %v122 = vpack.c.b16 %v108, %v107
  %v123 = vpack.c.b16 %v110, %v109
  %v124 = vpack.c.b16 %v112, %v111
  %v125 = vpack.c.b16 %v114, %v113
  %v126 = vpack.c.b16 %v116, %v115
  %v127 = vpack.c.b16 %v118, %v117
  %v128 = vpack.c.b16 %v120, %v119
  %v153 = vunpack.c.l.b16 %v73
  %v154 = vunpack.c.l.b16 %v74
  %v155 = vunpack.c.l.b16 %v75
  %v156 = vunpack.c.l.b16 %v76
  %v157 = vunpack.c.l.b16 %v77
  %v158 = vunpack.c.l.b16 %v78
  %v159 = vunpack.c.l.b16 %v79
  %v160 = vunpack.c.l.b16 %v80
  %v161 = vunpack.c.l.b16 %v81
  %v162 = vunpack.c.l.b16 %v82
  %v163 = vunpack.c.l.b16 %v83
  %v164 = vunpack.c.l.b16 %v84
  %v165 = vunpack.c.l.b16 %v85
  %v166 = vunpack.c.l.b16 %v86
  %v167 = vunpack.c.l.b16 %v87
  %v168 = vunpack.c.l.b16 %v88
  %v169 = vpack.c.b16 %v154, %v153
  %v170 = vpack.c.b16 %v156, %v155
  %v171 = vpack.c.b16 %v158, %v157
  %v172 = vpack.c.b16 %v160, %v159
  %v173 = vpack.c.b16 %v162, %v161
  %v174 = vpack.c.b16 %v164, %v163
  %v175 = vpack.c.b16 %v166, %v165
  %v176 = vpack.c.b16 %v168, %v167
  %185 = vmatprep.subr.bf16.mxu0 0
  %186 = vmatpush1.bf16.msra.mxu0 %v169
  %187 = vmatprep.subr.bf16.mxu0 0
  %188 = vmatpush1.bf16.msra.mxu0 %v170
  %189 = vmatprep.subr.bf16.mxu0 0
  %190 = vmatpush1.bf16.msra.mxu0 %v171
  %191 = vmatprep.subr.bf16.mxu0 0
  %192 = vmatpush1.bf16.msra.mxu0 %v172
  %193 = vmatprep.subr.bf16.mxu0 0
  %194 = vmatpush1.bf16.msra.mxu0 %v173
  %195 = vmatprep.subr.bf16.mxu0 0
  %196 = vmatpush1.bf16.msra.mxu0 %v174
  %197 = vmatprep.subr.bf16.mxu0 0
  %198 = vmatpush1.bf16.msra.mxu0 %v175
  %199 = vmatprep.subr.bf16.mxu0 0
  %200 = vmatpush1.bf16.msra.mxu0 %v176
  %201 = vmatprep.subr.bf16.mxu0 0
  %202 = vmatpush1.bf16.msra.mxu0 0
  %203 = vmatprep.subr.bf16.mxu0 0
  %204 = vmatpush1.bf16.msra.mxu0 0
  %205 = vmatprep.subr.bf16.mxu0 0
  %206 = vmatpush1.bf16.msra.mxu0 0
  %207 = vmatprep.subr.bf16.mxu0 0
  %208 = vmatpush1.bf16.msra.mxu0 0
  %209 = vmatprep.subr.bf16.mxu0 0
  %210 = vmatpush1.bf16.msra.mxu0 0
  %211 = vmatprep.subr.bf16.mxu0 0
  %212 = vmatpush1.bf16.msra.mxu0 0
  %213 = vmatprep.subr.bf16.mxu0 0
  %214 = vmatpush1.bf16.msra.mxu0 0
  %215 = vmatprep.subr.bf16.mxu0 0
  %216 = vmatpush1.bf16.msra.mxu0 0
  %217 = vmatprep.mubr.bf16.mxu0 0
  %218 = vmatmul.mubr.bf16.gmra.mrb[0].mxu0 %v121
  %v219 = vpop.f32.mrb[0].mxu0
  %v220 = vadd.f32 0.0, %v219
  %v221 = vpop.f32.mrb[0].mxu0
  %v222 = vpop.f32.mrb[0].mxu0
  %v223 = vadd.f32 0.0, %v222
  %v224 = vpop.f32.mrb[0].mxu0
  %225 = vmatprep.mubr.bf16.mxu0 0
  %226 = vmatmul.mubr.bf16.gmra.mrb[0].mxu0 %v122
  %v227 = vpop.f32.mrb[0].mxu0
  %v228 = vadd.f32 0.0, %v227
  %v229 = vpop.f32.mrb[0].mxu0
  %v230 = vpop.f32.mrb[0].mxu0
  %v231 = vadd.f32 0.0, %v230
  %v232 = vpop.f32.mrb[0].mxu0
  %233 = vmatprep.mubr.bf16.mxu0 0
  %234 = vmatmul.mubr.bf16.gmra.mrb[0].mxu0 %v123
  %v235 = vpop.f32.mrb[0].mxu0
  %v236 = vadd.f32 0.0, %v235
  %v237 = vpop.f32.mrb[0].mxu0
  %v238 = vpop.f32.mrb[0].mxu0
  %v239 = vadd.f32 0.0, %v238
  %v240 = vpop.f32.mrb[0].mxu0
  %241 = vmatprep.mubr.bf16.mxu0 0
  %242 = vmatmul.mubr.bf16.gmra.mrb[0].mxu0 %v124
  %v243 = vpop.f32.mrb[0].mxu0
  %v244 = vadd.f32 0.0, %v243
  %v245 = vpop.f32.mrb[0].mxu0
  %v246 = vpop.f32.mrb[0].mxu0
  %v247 = vadd.f32 0.0, %v246
  %v248 = vpop.f32.mrb[0].mxu0
  %249 = vmatprep.mubr.bf16.mxu0 0
  %250 = vmatmul.mubr.bf16.gmra.mrb[0].mxu0 %v125
  %v251 = vpop.f32.mrb[0].mxu0
  %v252 = vadd.f32 0.0, %v251
  %v253 = vpop.f32.mrb[0].mxu0
  %v254 = vpop.f32.mrb[0].mxu0
  %v255 = vadd.f32 0.0, %v254
  %v256 = vpop.f32.mrb[0].mxu0
  %257 = vmatprep.mubr.bf16.mxu0 0
  %258 = vmatmul.mubr.bf16.gmra.mrb[0].mxu0 %v126
  %v259 = vpop.f32.mrb[0].mxu0
  %v260 = vadd.f32 0.0, %v259
  %v261 = vpop.f32.mrb[0].mxu0
  %v262 = vpop.f32.mrb[0].mxu0
  %v263 = vadd.f32 0.0, %v262
  %v264 = vpop.f32.mrb[0].mxu0
  %265 = vmatprep.mubr.bf16.mxu0 0
  %266 = vmatmul.mubr.bf16.gmra.mrb[0].mxu0 %v127
  %v267 = vpop.f32.mrb[0].mxu0
  %v268 = vadd.f32 0.0, %v267
  %v269 = vpop.f32.mrb[0].mxu0
  %v270 = vpop.f32.mrb[0].mxu0
  %v271 = vadd.f32 0.0, %v270
  %v272 = vpop.f32.mrb[0].mxu0
  %273 = vmatprep.mubr.bf16.mxu0 0
  %274 = vmatmul.mubr.bf16.gmra.mrb[0].mxu0 %v128
  %v275 = vpop.f32.mrb[0].mxu0
  %v276 = vadd.f32 0.0, %v275
  %v277 = vpop.f32.mrb[0].mxu0
  %v278 = vpop.f32.mrb[0].mxu0
  %v279 = vadd.f32 0.0, %v278
  %v280 = vpop.f32.mrb[0].mxu0
  %281 = vdwg.mxu0
  %v282 = vadd.f32 %v41, %v220
  %v283 = vadd.f32 %v42, %v223
  %v284 = vadd.f32 %v43, %v228
  %v285 = vadd.f32 %v44, %v231
  %v286 = vadd.f32 %v45, %v236
  %v287 = vadd.f32 %v46, %v239
  %v288 = vadd.f32 %v47, %v244
  %v289 = vadd.f32 %v48, %v247
  %v290 = vadd.f32 %v49, %v252
  %v291 = vadd.f32 %v50, %v255
  %v292 = vadd.f32 %v51, %v260
  %v293 = vadd.f32 %v52, %v263
  %v294 = vadd.f32 %v53, %v268
  %v295 = vadd.f32 %v54, %v271
  %v296 = vadd.f32 %v55, %v276
  %v297 = vadd.f32 %v56, %v279
  %298 = vst [vmem:[#allocation2] sm:$0xff] %v282
  %299 = vst [vmem:[#allocation2 + $0x8] sm:$0xff] %v283
  %300 = vst [vmem:[#allocation2 + $0x10] sm:$0xff] %v284
  %301 = vst [vmem:[#allocation2 + $0x18] sm:$0xff] %v285
  %302 = vst [vmem:[#allocation2 + $0x20] sm:$0xff] %v286
  %303 = vst [vmem:[#allocation2 + $0x28] sm:$0xff] %v287
  %304 = vst [vmem:[#allocation2 + $0x30] sm:$0xff] %v288
  %305 = vst [vmem:[#allocation2 + $0x38] sm:$0xff] %v289
  %306 = vst [vmem:[#allocation2 + $0x40] sm:$0xff] %v290
  %307 = vst [vmem:[#allocation2 + $0x48] sm:$0xff] %v291
  %308 = vst [vmem:[#allocation2 + $0x50] sm:$0xff] %v292
  %309 = vst [vmem:[#allocation2 + $0x58] sm:$0xff] %v293
  %310 = vst [vmem:[#allocation2 + $0x60] sm:$0xff] %v294
  %311 = vst [vmem:[#allocation2 + $0x68] sm:$0xff] %v295
  %312 = vst [vmem:[#allocation2 + $0x70] sm:$0xff] %v296
  %313 = vst [vmem:[#allocation2 + $0x78] sm:$0xff] %v297
  // Predicated region
  $region26: #{encoder_forward.5} parent=0 // pred_check
    %p314 = pneg %p21
  $region27: #{encoder_forward.5} parent=0 // pred_check_branch
    %316 = sbr.rel (%p314) target = $region29
  $region28: #{encoder_forward.5} parent=0 // pred_region
    %v317 = vld [vmem:[#allocation2] sm:$0xff]
    %v318 = vld [vmem:[#allocation2 + $0x8] sm:$0xff]
    %v319 = vld [vmem:[#allocation2 + $0x10] sm:$0xff]
    %v320 = vld [vmem:[#allocation2 + $0x18] sm:$0xff]
    %v321 = vld [vmem:[#allocation2 + $0x20] sm:$0xff]
    %v322 = vld [vmem:[#allocation2 + $0x28] sm:$0xff]
    %v323 = vld [vmem:[#allocation2 + $0x30] sm:$0xff]
    %v324 = vld [vmem:[#allocation2 + $0x38] sm:$0xff]
    %v325 = vld [vmem:[#allocation2 + $0x40] sm:$0xff]
    %v326 = vld [vmem:[#allocation2 + $0x48] sm:$0xff]
    %v327 = vld [vmem:[#allocation2 + $0x50] sm:$0xff]
    %v328 = vld [vmem:[#allocation2 + $0x58] sm:$0xff]
    %v329 = vld [vmem:[#allocation2 + $0x60] sm:$0xff]
    %v330 = vld [vmem:[#allocation2 + $0x68] sm:$0xff]
    %v331 = vld [vmem:[#allocation2 + $0x70] sm:$0xff]
    %v332 = vld [vmem:[#allocation2 + $0x78] sm:$0xff]
    %v333 = vld [vmem:[%s2] sm:$0x1]
    %v335 = vlaneseq
    %v336 = vshrl.u32 %v335, 7
    %v337 = vsub.s32 0, %v336
    %v338 = vrot.slane %v333, %v337
    %v340 = vadd.f32 %v317, %v338
    %v341 = vadd.f32 %v318, %v338
    %v342 = vadd.f32 %v319, %v338
    %v343 = vadd.f32 %v320, %v338
    %v344 = vadd.f32 %v321, %v338
    %v345 = vadd.f32 %v322, %v338
    %v346 = vadd.f32 %v323, %v338
    %v347 = vadd.f32 %v324, %v338
    %v348 = vadd.f32 %v325, %v338
    %v349 = vadd.f32 %v326, %v338
    %v350 = vadd.f32 %v327, %v338
    %v351 = vadd.f32 %v328, %v338
    %v352 = vadd.f32 %v329, %v338
    %v353 = vadd.f32 %v330, %v338
    %v354 = vadd.f32 %v331, %v338
    %v355 = vadd.f32 %v332, %v338
    %vm356 = vcmp.gt.f32.partialorder %v340, 0.0
    %vm357 = vcmp.gt.f32.partialorder %v341, 0.0
    %vm358 = vcmp.gt.f32.partialorder %v342, 0.0
    %vm359 = vcmp.gt.f32.partialorder %v343, 0.0
    %vm360 = vcmp.gt.f32.partialorder %v344, 0.0
    %vm361 = vcmp.gt.f32.partialorder %v345, 0.0
    %vm362 = vcmp.gt.f32.partialorder %v346, 0.0
    %vm363 = vcmp.gt.f32.partialorder %v347, 0.0
    %vm364 = vcmp.gt.f32.partialorder %v348, 0.0
    %vm365 = vcmp.gt.f32.partialorder %v349, 0.0
    %vm366 = vcmp.gt.f32.partialorder %v350, 0.0
    %vm367 = vcmp.gt.f32.partialorder %v351, 0.0
    %vm368 = vcmp.gt.f32.partialorder %v352, 0.0
    %vm369 = vcmp.gt.f32.partialorder %v353, 0.0
    %vm370 = vcmp.gt.f32.partialorder %v354, 0.0
    %vm371 = vcmp.gt.f32.partialorder %v355, 0.0
    %v372 = vmul.f32 %v340, 0.2
    %v373 = vmul.f32 %v341, 0.2
    %v374 = vmul.f32 %v342, 0.2
    %v375 = vmul.f32 %v343, 0.2
    %v376 = vmul.f32 %v344, 0.2
    %v377 = vmul.f32 %v345, 0.2
    %v378 = vmul.f32 %v346, 0.2
    %v379 = vmul.f32 %v347, 0.2
    %v380 = vmul.f32 %v348, 0.2
    %v381 = vmul.f32 %v349, 0.2
    %v382 = vmul.f32 %v350, 0.2
    %v383 = vmul.f32 %v351, 0.2
    %v384 = vmul.f32 %v352, 0.2
    %v385 = vmul.f32 %v353, 0.2
    %v386 = vmul.f32 %v354, 0.2
    %v387 = vmul.f32 %v355, 0.2
    %v388 = vsel %vm356, %v340, %v372
    %v389 = vsel %vm357, %v341, %v373
    %v390 = vsel %vm358, %v342, %v374
    %v391 = vsel %vm359, %v343, %v375
    %v392 = vsel %vm360, %v344, %v376
    %v393 = vsel %vm361, %v345, %v377
    %v394 = vsel %vm362, %v346, %v378
    %v395 = vsel %vm363, %v347, %v379
    %v396 = vsel %vm364, %v348, %v380
    %v397 = vsel %vm365, %v349, %v381
    %v398 = vsel %vm366, %v350, %v382
    %v399 = vsel %vm367, %v351, %v383
    %v400 = vsel %vm368, %v352, %v384
    %v401 = vsel %vm369, %v353, %v385
    %v402 = vsel %vm370, %v354, %v386
    %v403 = vsel %vm371, %v355, %v387
    %v404 = vld [vmem:[%s3] sm:$0x1]
    %v406 = vlaneseq
    %v407 = vshrl.u32 %v406, 7
    %v408 = vsub.s32 0, %v407
    %v409 = vrot.slane %v404, %v408
    %v411 = vmul.f32 %v388, %v409
    %v412 = vmul.f32 %v389, %v409
    %v413 = vmul.f32 %v390, %v409
    %v414 = vmul.f32 %v391, %v409
    %v415 = vmul.f32 %v392, %v409
    %v416 = vmul.f32 %v393, %v409
    %v417 = vmul.f32 %v394, %v409
    %v418 = vmul.f32 %v395, %v409
    %v419 = vmul.f32 %v396, %v409
    %v420 = vmul.f32 %v397, %v409
    %v421 = vmul.f32 %v398, %v409
    %v422 = vmul.f32 %v399, %v409
    %v423 = vmul.f32 %v400, %v409
    %v424 = vmul.f32 %v401, %v409
    %v425 = vmul.f32 %v402, %v409
    %v426 = vmul.f32 %v403, %v409
    %v427 = vld [vmem:[%s4] sm:$0x1]
    %v429 = vlaneseq
    %v430 = vshrl.u32 %v429, 7
    %v431 = vsub.s32 0, %v430
    %v432 = vrot.slane %v427, %v431
    %v434 = vadd.f32 %v411, %v432
    %v435 = vadd.f32 %v412, %v432
    %v436 = vadd.f32 %v413, %v432
    %v437 = vadd.f32 %v414, %v432
    %v438 = vadd.f32 %v415, %v432
    %v439 = vadd.f32 %v416, %v432
    %v440 = vadd.f32 %v417, %v432
    %v441 = vadd.f32 %v418, %v432
    %v442 = vadd.f32 %v419, %v432
    %v443 = vadd.f32 %v420, %v432
    %v444 = vadd.f32 %v421, %v432
    %v445 = vadd.f32 %v422, %v432
    %v446 = vadd.f32 %v423, %v432
    %v447 = vadd.f32 %v424, %v432
    %v448 = vadd.f32 %v425, %v432
    %v449 = vadd.f32 %v426, %v432
    %v450 = vpack.c.bf16 %v435, %v434
    %v451 = vpack.c.bf16 %v437, %v436
    %v452 = vpack.c.bf16 %v439, %v438
    %v453 = vpack.c.bf16 %v441, %v440
    %v454 = vpack.c.bf16 %v443, %v442
    %v455 = vpack.c.bf16 %v445, %v444
    %v456 = vpack.c.bf16 %v447, %v446
    %v457 = vpack.c.bf16 %v449, %v448
    %v466 = vunpack.c.l.b16 %v450
    %v467 = vunpack.c.h.b16 %v450
    %v468 = vunpack.c.l.b16 %v451
    %v469 = vunpack.c.h.b16 %v451
    %v470 = vunpack.c.l.b16 %v452
    %v471 = vunpack.c.h.b16 %v452
    %v472 = vunpack.c.l.b16 %v453
    %v473 = vunpack.c.h.b16 %v453
    %v474 = vunpack.c.l.b16 %v454
    %v475 = vunpack.c.h.b16 %v454
    %v476 = vunpack.c.l.b16 %v455
    %v477 = vunpack.c.h.b16 %v455
    %v478 = vunpack.c.l.b16 %v456
    %v479 = vunpack.c.h.b16 %v456
    %v480 = vunpack.c.l.b16 %v457
    %v481 = vunpack.c.h.b16 %v457
    %v482 = vpack.c.b16 %v466, %v466
    %v483 = vpack.c.b16 %v467, %v467
    %v484 = vpack.c.b16 %v468, %v468
    %v485 = vpack.c.b16 %v469, %v469
    %v486 = vpack.c.b16 %v470, %v470
    %v487 = vpack.c.b16 %v471, %v471
    %v488 = vpack.c.b16 %v472, %v472
    %v489 = vpack.c.b16 %v473, %v473
    %v490 = vpack.c.b16 %v474, %v474
    %v491 = vpack.c.b16 %v475, %v475
    %v492 = vpack.c.b16 %v476, %v476
    %v493 = vpack.c.b16 %v477, %v477
    %v494 = vpack.c.b16 %v478, %v478
    %v495 = vpack.c.b16 %v479, %v479
    %v496 = vpack.c.b16 %v480, %v480
    %v497 = vpack.c.b16 %v481, %v481
    %514 = vst [vmem:[%s5] sm:$0xf] %v482
    %515 = vst [vmem:[%s5 + $0x4] sm:$0xf] %v483
    %516 = vst [vmem:[%s5 + $0x8] sm:$0xf] %v484
    %517 = vst [vmem:[%s5 + $0xc] sm:$0xf] %v485
    %518 = vst [vmem:[%s5 + $0x10] sm:$0xf] %v486
    %519 = vst [vmem:[%s5 + $0x14] sm:$0xf] %v487
    %520 = vst [vmem:[%s5 + $0x18] sm:$0xf] %v488
    %521 = vst [vmem:[%s5 + $0x1c] sm:$0xf] %v489
    %522 = vst [vmem:[%s5 + $0x20] sm:$0xf] %v490
    %523 = vst [vmem:[%s5 + $0x24] sm:$0xf] %v491
    %524 = vst [vmem:[%s5 + $0x28] sm:$0xf] %v492
    %525 = vst [vmem:[%s5 + $0x2c] sm:$0xf] %v493
    %526 = vst [vmem:[%s5 + $0x30] sm:$0xf] %v494
    %527 = vst [vmem:[%s5 + $0x34] sm:$0xf] %v495
    %528 = vst [vmem:[%s5 + $0x38] sm:$0xf] %v496
    %529 = vst [vmem:[%s5 + $0x3c] sm:$0xf] %v497
  $region29: #{encoder_forward.5} parent=0 // pred_fallthru
    _
  // Predicated region
  $region30: #{encoder_forward.5} parent=0 // pred_check
    _
  $region31: #{encoder_forward.5} parent=0 // pred_check_branch
    %531 = sbr.rel (0) target = $region33
  $region32: #{encoder_forward.5} parent=0 // pred_region
    _
  $region33: #{encoder_forward.5} parent=0 // pred_fallthru
    _
  // Predicated region
  $region34: #{encoder_forward.5} parent=0 // pred_check
    _
  $region35: #{encoder_forward.5} parent=0 // pred_check_branch
    %533 = sbr.rel (0) target = $region37
  $region36: #{encoder_forward.5} parent=0 // pred_region
    _
  $region37: #{encoder_forward.5} parent=0 // pred_fallthru
    _

// kernel: encoder_forward.6
$region0: #{encoder_forward.6}
  #allocation0 [shape = 'u32[]', space=smem, size = 0x4, offset = 0x4, fixed_abs, tag = 'smem constant byte address 0x4 - core index']
  #allocation1 [shape = 'u32[144,128]{1,0:T(1,128)}', space=vmem, size = 0x12000, scoped, tag = 'internal scratch']
  #allocation2 [shape = 'f32[32,128]{1,0:T(8,128)}', space=vmem, size = 0x4000, scoped, tag = 'scratch operand']
  %s0 = inlined_call_operand.vmem [shape: bf16[32,256], index: 0, kind: input, shape index: {}]
  %s1 = inlined_call_operand.vmem [shape: bf16[256,128], index: 1, kind: input, shape index: {}]
  %s2 = inlined_call_operand.vmem [shape: f32[1,128], index: 2, kind: input, shape index: {}]
  %s3 = inlined_call_operand.vmem [shape: f32[1,128], index: 3, kind: input, shape index: {}]
  %s4 = inlined_call_operand.vmem [shape: f32[1,128], index: 4, kind: input, shape index: {}]
  %s5 = inlined_call_operand.vmem [shape: bf16[32,128], index: 5, kind: output, shape index: {}]
  %s6 = sld [smem:[#allocation0]]
  $region38: #{encoder_forward.6} parent=0
    _
  %s8 = ssub.s32 1, %s6
  %s9 = scalar_select 0, %s8, %s6
  // Predicated region
  $region2: #{encoder_forward.6} parent=0 // pred_check
    _
  $region3: #{encoder_forward.6} parent=0 // pred_check_branch
    %11 = sbr.rel (0) target = $region5
  $region4: #{encoder_forward.6} parent=0 // pred_region
    _
  $region5: #{encoder_forward.6} parent=0 // pred_fallthru
    _
  // Predicated region
  $region6: #{encoder_forward.6} parent=0 // pred_check
    _
  $region7: #{encoder_forward.6} parent=0 // pred_check_branch
    %13 = sbr.rel (0) target = $region9
  $region8: #{encoder_forward.6} parent=0 // pred_region
    _
  $region9: #{encoder_forward.6} parent=0 // pred_fallthru
    _
  // Predicated region
  $region10: #{encoder_forward.6} parent=0 // pred_check
    _
  $region11: #{encoder_forward.6} parent=0 // pred_check_branch
    %15 = sbr.rel (0) target = $region13
  $region12: #{encoder_forward.6} parent=0 // pred_region
    _
  $region13: #{encoder_forward.6} parent=0 // pred_fallthru
    _
  // Predicated region
  $region14: #{encoder_forward.6} parent=0 // pred_check
    _
  $region15: #{encoder_forward.6} parent=0 // pred_check_branch
    %17 = sbr.rel (0) target = $region17
  $region16: #{encoder_forward.6} parent=0 // pred_region
    _
  $region17: #{encoder_forward.6} parent=0 // pred_fallthru
    _
  // Predicated region
  $region18: #{encoder_forward.6} parent=0 // pred_check
    _
  $region19: #{encoder_forward.6} parent=0 // pred_check_branch
    %19 = sbr.rel (0) target = $region21
  $region20: #{encoder_forward.6} parent=0 // pred_region
    _
  $region21: #{encoder_forward.6} parent=0 // pred_fallthru
    _
  %p21 = scmp.eq.s32.totalorder 0, 0
  // Predicated region
  $region22: #{encoder_forward.6} parent=0 // pred_check
    %p22 = pneg %p21
  $region23: #{encoder_forward.6} parent=0 // pred_check_branch
    %24 = sbr.rel (%p22) target = $region25
  $region24: #{encoder_forward.6} parent=0 // pred_region
    %25 = vst [vmem:[#allocation2] sm:$0xff] 0.0
    %26 = vst [vmem:[#allocation2 + $0x8] sm:$0xff] 0.0
    %27 = vst [vmem:[#allocation2 + $0x10] sm:$0xff] 0.0
    %28 = vst [vmem:[#allocation2 + $0x18] sm:$0xff] 0.0
  $region25: #{encoder_forward.6} parent=0 // pred_fallthru
    _
  %v29 = vld [vmem:[#allocation2] sm:$0xff]
  %v30 = vld [vmem:[#allocation2 + $0x8] sm:$0xff]
  %v31 = vld [vmem:[#allocation2 + $0x10] sm:$0xff]
  %v32 = vld [vmem:[#allocation2 + $0x18] sm:$0xff]
  %v33 = vld [vmem:[%s0] sm:$0xff]
  %v34 = vld [vmem:[%s0 + $0x8] sm:$0xff]
  %v35 = vld [vmem:[%s0 + $0x10] sm:$0xff]
  %v36 = vld [vmem:[%s0 + $0x18] sm:$0xff]
  %v37 = vld [vmem:[%s1] sm:$0xf]
  %v38 = vld [vmem:[%s1 + $0x4] sm:$0xf]
  %v39 = vld [vmem:[%s1 + $0x8] sm:$0xf]
  %v40 = vld [vmem:[%s1 + $0xc] sm:$0xf]
  %v41 = vld [vmem:[%s1 + $0x10] sm:$0xf]
  %v42 = vld [vmem:[%s1 + $0x14] sm:$0xf]
  %v43 = vld [vmem:[%s1 + $0x18] sm:$0xf]
  %v44 = vld [vmem:[%s1 + $0x1c] sm:$0xf]
  %v45 = vld [vmem:[%s1 + $0x20] sm:$0xf]
  %v46 = vld [vmem:[%s1 + $0x24] sm:$0xf]
  %v47 = vld [vmem:[%s1 + $0x28] sm:$0xf]
  %v48 = vld [vmem:[%s1 + $0x2c] sm:$0xf]
  %v49 = vld [vmem:[%s1 + $0x30] sm:$0xf]
  %v50 = vld [vmem:[%s1 + $0x34] sm:$0xf]
  %v51 = vld [vmem:[%s1 + $0x38] sm:$0xf]
  %v52 = vld [vmem:[%s1 + $0x3c] sm:$0xf]
  %v53 = vld [vmem:[%s1 + $0x40] sm:$0xf]
  %v54 = vld [vmem:[%s1 + $0x44] sm:$0xf]
  %v55 = vld [vmem:[%s1 + $0x48] sm:$0xf]
  %v56 = vld [vmem:[%s1 + $0x4c] sm:$0xf]
  %v57 = vld [vmem:[%s1 + $0x50] sm:$0xf]
  %v58 = vld [vmem:[%s1 + $0x54] sm:$0xf]
  %v59 = vld [vmem:[%s1 + $0x58] sm:$0xf]
  %v60 = vld [vmem:[%s1 + $0x5c] sm:$0xf]
  %v61 = vld [vmem:[%s1 + $0x60] sm:$0xf]
  %v62 = vld [vmem:[%s1 + $0x64] sm:$0xf]
  %v63 = vld [vmem:[%s1 + $0x68] sm:$0xf]
  %v64 = vld [vmem:[%s1 + $0x6c] sm:$0xf]
  %v65 = vld [vmem:[%s1 + $0x70] sm:$0xf]
  %v66 = vld [vmem:[%s1 + $0x74] sm:$0xf]
  %v67 = vld [vmem:[%s1 + $0x78] sm:$0xf]
  %v68 = vld [vmem:[%s1 + $0x7c] sm:$0xf]
  %v73 = vunpack.c.l.b16 %v33
  %v74 = vunpack.c.h.b16 %v33
  %v75 = vunpack.c.l.b16 %v34
  %v76 = vunpack.c.h.b16 %v34
  %v77 = vunpack.c.l.b16 %v35
  %v78 = vunpack.c.h.b16 %v35
  %v79 = vunpack.c.l.b16 %v36
  %v80 = vunpack.c.h.b16 %v36
  %v81 = vpack.c.b16 %v75, %v73
  %v82 = vpack.c.b16 %v76, %v74
  %v83 = vpack.c.b16 %v79, %v77
  %v84 = vpack.c.b16 %v80, %v78
  %v121 = vunpack.c.l.b16 %v37
  %v122 = vunpack.c.l.b16 %v38
  %v123 = vunpack.c.l.b16 %v39
  %v124 = vunpack.c.l.b16 %v40
  %v125 = vunpack.c.l.b16 %v41
  %v126 = vunpack.c.l.b16 %v42
  %v127 = vunpack.c.l.b16 %v43
  %v128 = vunpack.c.l.b16 %v44
  %v129 = vunpack.c.l.b16 %v45
  %v130 = vunpack.c.l.b16 %v46
  %v131 = vunpack.c.l.b16 %v47
  %v132 = vunpack.c.l.b16 %v48
  %v133 = vunpack.c.l.b16 %v49
  %v134 = vunpack.c.l.b16 %v50
  %v135 = vunpack.c.l.b16 %v51
  %v136 = vunpack.c.l.b16 %v52
  %v137 = vunpack.c.l.b16 %v53
  %v138 = vunpack.c.l.b16 %v54
  %v139 = vunpack.c.l.b16 %v55
  %v140 = vunpack.c.l.b16 %v56
  %v141 = vunpack.c.l.b16 %v57
  %v142 = vunpack.c.l.b16 %v58
  %v143 = vunpack.c.l.b16 %v59
  %v144 = vunpack.c.l.b16 %v60
  %v145 = vunpack.c.l.b16 %v61
  %v146 = vunpack.c.l.b16 %v62
  %v147 = vunpack.c.l.b16 %v63
  %v148 = vunpack.c.l.b16 %v64
  %v149 = vunpack.c.l.b16 %v65
  %v150 = vunpack.c.l.b16 %v66
  %v151 = vunpack.c.l.b16 %v67
  %v152 = vunpack.c.l.b16 %v68
  %v153 = vpack.c.b16 %v122, %v121
  %v154 = vpack.c.b16 %v124, %v123
  %v155 = vpack.c.b16 %v126, %v125
  %v156 = vpack.c.b16 %v128, %v127
  %v157 = vpack.c.b16 %v130, %v129
  %v158 = vpack.c.b16 %v132, %v131
  %v159 = vpack.c.b16 %v134, %v133
  %v160 = vpack.c.b16 %v136, %v135
  %v161 = vpack.c.b16 %v138, %v137
  %v162 = vpack.c.b16 %v140, %v139
  %v163 = vpack.c.b16 %v142, %v141
  %v164 = vpack.c.b16 %v144, %v143
  %v165 = vpack.c.b16 %v146, %v145
  %v166 = vpack.c.b16 %v148, %v147
  %v167 = vpack.c.b16 %v150, %v149
  %v168 = vpack.c.b16 %v152, %v151
  %185 = vmatprep.subr.bf16.mxu0 0
  %186 = vmatpush1.bf16.msra.mxu0 %v153
  %187 = vmatprep.subr.bf16.mxu0 0
  %188 = vmatpush1.bf16.msra.mxu0 %v154
  %189 = vmatprep.subr.bf16.mxu0 0
  %190 = vmatpush1.bf16.msra.mxu0 %v155
  %191 = vmatprep.subr.bf16.mxu0 0
  %192 = vmatpush1.bf16.msra.mxu0 %v156
  %193 = vmatprep.subr.bf16.mxu0 0
  %194 = vmatpush1.bf16.msra.mxu0 %v157
  %195 = vmatprep.subr.bf16.mxu0 0
  %196 = vmatpush1.bf16.msra.mxu0 %v158
  %197 = vmatprep.subr.bf16.mxu0 0
  %198 = vmatpush1.bf16.msra.mxu0 %v159
  %199 = vmatprep.subr.bf16.mxu0 0
  %200 = vmatpush1.bf16.msra.mxu0 %v160
  %201 = vmatprep.subr.bf16.mxu0 0
  %202 = vmatpush1.bf16.msra.mxu0 %v161
  %203 = vmatprep.subr.bf16.mxu0 0
  %204 = vmatpush1.bf16.msra.mxu0 %v162
  %205 = vmatprep.subr.bf16.mxu0 0
  %206 = vmatpush1.bf16.msra.mxu0 %v163
  %207 = vmatprep.subr.bf16.mxu0 0
  %208 = vmatpush1.bf16.msra.mxu0 %v164
  %209 = vmatprep.subr.bf16.mxu0 0
  %210 = vmatpush1.bf16.msra.mxu0 %v165
  %211 = vmatprep.subr.bf16.mxu0 0
  %212 = vmatpush1.bf16.msra.mxu0 %v166
  %213 = vmatprep.subr.bf16.mxu0 0
  %214 = vmatpush1.bf16.msra.mxu0 %v167
  %215 = vmatprep.subr.bf16.mxu0 0
  %216 = vmatpush1.bf16.msra.mxu0 %v168
  %217 = vmatprep.mubr.bf16.mxu0 %v82
  %218 = vmatmul.mubr.bf16.gmra.mrb[0].mxu0 %v81
  %v219 = vpop.f32.mrb[0].mxu0
  %v220 = vadd.f32 0.0, %v219
  %v221 = vpop.f32.mrb[0].mxu0
  %v222 = vpop.f32.mrb[0].mxu0
  %v223 = vadd.f32 0.0, %v222
  %v224 = vpop.f32.mrb[0].mxu0
  %225 = vmatprep.mubr.bf16.mxu0 %v84
  %226 = vmatmul.mubr.bf16.gmra.mrb[0].mxu0 %v83
  %v227 = vpop.f32.mrb[0].mxu0
  %v228 = vadd.f32 0.0, %v227
  %v229 = vpop.f32.mrb[0].mxu0
  %v230 = vpop.f32.mrb[0].mxu0
  %v231 = vadd.f32 0.0, %v230
  %v232 = vpop.f32.mrb[0].mxu0
  %233 = vdwg.mxu0
  %v234 = vadd.f32 %v29, %v220
  %v235 = vadd.f32 %v30, %v223
  %v236 = vadd.f32 %v31, %v228
  %v237 = vadd.f32 %v32, %v231
  %238 = vst [vmem:[#allocation2] sm:$0xff] %v234
  %239 = vst [vmem:[#allocation2 + $0x8] sm:$0xff] %v235
  %240 = vst [vmem:[#allocation2 + $0x10] sm:$0xff] %v236
  %241 = vst [vmem:[#allocation2 + $0x18] sm:$0xff] %v237
  // Predicated region
  $region26: #{encoder_forward.6} parent=0 // pred_check
    %p242 = pneg %p21
  $region27: #{encoder_forward.6} parent=0 // pred_check_branch
    %244 = sbr.rel (%p242) target = $region29
  $region28: #{encoder_forward.6} parent=0 // pred_region
    %v245 = vld [vmem:[#allocation2] sm:$0xff]
    %v246 = vld [vmem:[#allocation2 + $0x8] sm:$0xff]
    %v247 = vld [vmem:[#allocation2 + $0x10] sm:$0xff]
    %v248 = vld [vmem:[#allocation2 + $0x18] sm:$0xff]
    %v249 = vld [vmem:[%s2] sm:$0x1]
    %v251 = vlaneseq
    %v252 = vshrl.u32 %v251, 7
    %v253 = vsub.s32 0, %v252
    %v254 = vrot.slane %v249, %v253
    %v256 = vadd.f32 %v245, %v254
    %v257 = vadd.f32 %v246, %v254
    %v258 = vadd.f32 %v247, %v254
    %v259 = vadd.f32 %v248, %v254
    %vm260 = vcmp.gt.f32.partialorder %v256, 0.0
    %vm261 = vcmp.gt.f32.partialorder %v257, 0.0
    %vm262 = vcmp.gt.f32.partialorder %v258, 0.0
    %vm263 = vcmp.gt.f32.partialorder %v259, 0.0
    %v264 = vmul.f32 %v256, 0.2
    %v265 = vmul.f32 %v257, 0.2
    %v266 = vmul.f32 %v258, 0.2
    %v267 = vmul.f32 %v259, 0.2
    %v268 = vsel %vm260, %v256, %v264
    %v269 = vsel %vm261, %v257, %v265
    %v270 = vsel %vm262, %v258, %v266
    %v271 = vsel %vm263, %v259, %v267
    %v272 = vld [vmem:[%s3] sm:$0x1]
    %v274 = vlaneseq
    %v275 = vshrl.u32 %v274, 7
    %v276 = vsub.s32 0, %v275
    %v277 = vrot.slane %v272, %v276
    %v279 = vmul.f32 %v268, %v277
    %v280 = vmul.f32 %v269, %v277
    %v281 = vmul.f32 %v270, %v277
    %v282 = vmul.f32 %v271, %v277
    %v283 = vld [vmem:[%s4] sm:$0x1]
    %v285 = vlaneseq
    %v286 = vshrl.u32 %v285, 7
    %v287 = vsub.s32 0, %v286
    %v288 = vrot.slane %v283, %v287
    %v290 = vadd.f32 %v279, %v288
    %v291 = vadd.f32 %v280, %v288
    %v292 = vadd.f32 %v281, %v288
    %v293 = vadd.f32 %v282, %v288
    %v294 = vpack.c.bf16 %v291, %v290
    %v295 = vpack.c.bf16 %v293, %v292
    %v298 = vunpack.c.l.b16 %v294
    %v299 = vunpack.c.h.b16 %v294
    %v300 = vunpack.c.l.b16 %v295
    %v301 = vunpack.c.h.b16 %v295
    %v302 = vpack.c.b16 %v298, %v298
    %v303 = vpack.c.b16 %v299, %v299
    %v304 = vpack.c.b16 %v300, %v300
    %v305 = vpack.c.b16 %v301, %v301
    %310 = vst [vmem:[%s5] sm:$0xf] %v302
    %311 = vst [vmem:[%s5 + $0x4] sm:$0xf] %v303
    %312 = vst [vmem:[%s5 + $0x8] sm:$0xf] %v304
    %313 = vst [vmem:[%s5 + $0xc] sm:$0xf] %v305
  $region29: #{encoder_forward.6} parent=0 // pred_fallthru
    _
  // Predicated region
  $region30: #{encoder_forward.6} parent=0 // pred_check
    _
  $region31: #{encoder_forward.6} parent=0 // pred_check_branch
    %315 = sbr.rel (0) target = $region33
  $region32: #{encoder_forward.6} parent=0 // pred_region
    _
  $region33: #{encoder_forward.6} parent=0 // pred_fallthru
    _
  // Predicated region
  $region34: #{encoder_forward.6} parent=0 // pred_check
    _
  $region35: #{encoder_forward.6} parent=0 // pred_check_branch
    %317 = sbr.rel (0) target = $region37
  $region36: #{encoder_forward.6} parent=0 // pred_region
    _
  $region37: #{encoder_forward.6} parent=0 // pred_fallthru
    _

// kernel: encoder_forward.8
$region0: #{encoder_forward.8}
  #allocation0 [shape = 'u32[]', space=smem, size = 0x4, offset = 0x4, fixed_abs, tag = 'smem constant byte address 0x4 - core index']
  #allocation1 [shape = 'u32[144,128]{1,0:T(1,128)}', space=vmem, size = 0x12000, scoped, tag = 'internal scratch']
  #allocation2 [shape = 'f32[8,128]{1,0:T(8,128)}', space=vmem, size = 0x1000, scoped, tag = 'scratch operand']
  %s0 = inlined_call_operand.vmem [shape: bf16[8,640], index: 0, kind: input, shape index: {}]
  %s1 = inlined_call_operand.vmem [shape: bf16[640,128], index: 1, kind: input, shape index: {}]
  %s2 = inlined_call_operand.vmem [shape: f32[1,128], index: 2, kind: input, shape index: {}]
  %s3 = inlined_call_operand.vmem [shape: f32[1,128], index: 3, kind: input, shape index: {}]
  %s4 = inlined_call_operand.vmem [shape: f32[1,128], index: 4, kind: input, shape index: {}]
  %s5 = inlined_call_operand.vmem [shape: bf16[8,128], index: 5, kind: output, shape index: {}]
  %s6 = sld [smem:[#allocation0]]
  $region61: #{encoder_forward.8} parent=0
    _
  %s8 = ssub.s32 1, %s6
  %s9 = scalar_select 0, %s8, %s6
  loop: start=0, step=1, limit=7
  $region2: #{encoder_forward.8} parent=0 // loop_pre_header
    _
  $region3: #{encoder_forward.8} parent=0 // loop_header
    %s11 = sphi 0, %s15
    %p12 = scmp.ge.s32.totalorder %s11, 7
    %s18 = sphi 0, %s37
    %s19 = sphi 0, %s33
    %s20 = sphi 0, %s29
    %s21 = sphi 0, %s18
    %s22 = sphi 0, %s19
    %s23 = sphi 0, %s20
    %s24 = sphi 0, %s21
    %s25 = sphi 0, %s22
    %s26 = sphi 0, %s23
    %s42 = sphi 0, %s44
    %s45 = sphi 0, %s42
    %s46 = sphi 0, %s45
    %s62 = sphi 0, %s46
    %s70 = sphi 0, %s72
    %s73 = sphi 0, %s70
    %s74 = sphi 0, %s73
    %s90 = sphi 0, %s74
    %s96 = sphi 0, %s98
    %s99 = sphi 0, %s96
    %s100 = sphi 0, %s99
    %s116 = sphi 0, %s100
    %s122 = sphi 0, %s124
    %s125 = sphi 0, %s122
    %s126 = sphi 0, %s125
    %s142 = sphi 0, %s126
    %s148 = sphi 0, %s150
    %s151 = sphi 0, %s148
    %s152 = sphi 0, %s151
    %s168 = sphi 0, %s152
    %s176 = sphi 0, %s178
    %s179 = sphi 0, %s176
    %s180 = sphi 0, %s179
    %s196 = sphi 0, %s180
  $region4: #{encoder_forward.8} parent=0 // loop_header_branch
    %14 = sbr.rel (%p12) target = $region8
  $region5: #{encoder_forward.8} parent=0 // loop_body
    %s16 = ssub.s32 %s11, 1
    %s17 = ssub.s32 %s11, 2
    %s27 = sadd.s32 1, %s20
    %p28 = scmp.ge.s32.totalorder %s27, 5
    %s29 = scalar_select %p28, 0, %s27
    %s30 = sadd.s32 1, %s19
    %s31 = scalar_select %p28, %s30, %s19
    %p32 = scmp.ge.s32.totalorder %s31, 1
    %s33 = scalar_select %p32, 0, %s31
    %s34 = sadd.s32 1, %s18
    %s35 = scalar_select %p32, %s34, %s18
    %p36 = scmp.ge.s32.totalorder %s35, 1
    %s37 = scalar_select %p36, 0, %s35
    %s38 = ssub.s32 %s18, %s37
    %s39 = ssub.s32 %s20, %s29
    %s40 = sor.u32 %s38, %s39
    %p41 = scmp.eq.s32.totalorder %s40, 0
    %s43 = sadd.s32 %s42, 1
    %s44 = scalar_select %p41, %s42, %s43
    %p47 = pneg %p41
    %p48 = scmp.eq.s32.totalorder %s11, 4
    %p49 = por %p47, %p48
    %p50 = scmp.ne.s32.totalorder %s42, %s45
    %p51 = scmp.eq.s32.totalorder %s11, 0
    %p52 = por %p50, %p51
    %p53 = scmp.ne.s32.totalorder %s42, %s45
    %p54 = scmp.eq.s32.totalorder %s16, 4
    %p55 = por %p53, %p54
    %p56 = scmp.ne.s32.totalorder %s45, %s46
    %p57 = scmp.eq.s32.totalorder %s16, 0
    %p58 = por %p56, %p57
    %p59 = scmp.ne.s32.totalorder %s45, %s46
    %p60 = scmp.eq.s32.totalorder %s17, 4
    %p61 = por %p59, %p60
    %p63 = scmp.ne.s32.totalorder %s46, %s62
    %p64 = scmp.eq.s32.totalorder %s17, 0
    %p65 = por %p63, %p64
    %s66 = ssub.s32 %s20, %s29
    %s67 = ssub.s32 %s19, %s33
    %s68 = sor.u32 %s66, %s67
    %p69 = scmp.eq.s32.totalorder %s68, 0
    %s71 = sadd.s32 %s70, 1
    %s72 = scalar_select %p69, %s70, %s71
    %p75 = pneg %p69
    %p76 = scmp.eq.s32.totalorder %s11, 4
    %p77 = por %p75, %p76
    %p78 = scmp.ne.s32.totalorder %s70, %s73
    %p79 = scmp.eq.s32.totalorder %s11, 0
    %p80 = por %p78, %p79
    %p81 = scmp.ne.s32.totalorder %s70, %s73
    %p82 = scmp.eq.s32.totalorder %s16, 4
    %p83 = por %p81, %p82
    %p84 = scmp.ne.s32.totalorder %s73, %s74
    %p85 = scmp.eq.s32.totalorder %s16, 0
    %p86 = por %p84, %p85
    %p87 = scmp.ne.s32.totalorder %s73, %s74
    %p88 = scmp.eq.s32.totalorder %s17, 4
    %p89 = por %p87, %p88
    %p91 = scmp.ne.s32.totalorder %s74, %s90
    %p92 = scmp.eq.s32.totalorder %s17, 0
    %p93 = por %p91, %p92
    %s94 = ssub.s32 %s19, %s33
    %p95 = scmp.eq.s32.totalorder %s94, 0
    %s97 = sadd.s32 %s96, 1
    %s98 = scalar_select %p95, %s96, %s97
    %p101 = pneg %p95
    %p102 = scmp.eq.s32.totalorder %s11, 4
    %p103 = por %p101, %p102
    %p104 = scmp.ne.s32.totalorder %s96, %s99
    %p105 = scmp.eq.s32.totalorder %s11, 0
    %p106 = por %p104, %p105
    %p107 = scmp.ne.s32.totalorder %s96, %s99
    %p108 = scmp.eq.s32.totalorder %s16, 4
    %p109 = por %p107, %p108
    %p110 = scmp.ne.s32.totalorder %s99, %s100
    %p111 = scmp.eq.s32.totalorder %s16, 0
    %p112 = por %p110, %p111
    %p113 = scmp.ne.s32.totalorder %s99, %s100
    %p114 = scmp.eq.s32.totalorder %s17, 4
    %p115 = por %p113, %p114
    %p117 = scmp.ne.s32.totalorder %s100, %s116
    %p118 = scmp.eq.s32.totalorder %s17, 0
    %p119 = por %p117, %p118
    %s120 = ssub.s32 %s19, %s33
    %p121 = scmp.eq.s32.totalorder %s120, 0
    %s123 = sadd.s32 %s122, 1
    %s124 = scalar_select %p121, %s122, %s123
    %p127 = pneg %p121
    %p128 = scmp.eq.s32.totalorder %s11, 4
    %p129 = por %p127, %p128
    %p130 = scmp.ne.s32.totalorder %s122, %s125
    %p131 = scmp.eq.s32.totalorder %s11, 0
    %p132 = por %p130, %p131
    %p133 = scmp.ne.s32.totalorder %s122, %s125
    %p134 = scmp.eq.s32.totalorder %s16, 4
    %p135 = por %p133, %p134
    %p136 = scmp.ne.s32.totalorder %s125, %s126
    %p137 = scmp.eq.s32.totalorder %s16, 0
    %p138 = por %p136, %p137
    %p139 = scmp.ne.s32.totalorder %s125, %s126
    %p140 = scmp.eq.s32.totalorder %s17, 4
    %p141 = por %p139, %p140
    %p143 = scmp.ne.s32.totalorder %s126, %s142
    %p144 = scmp.eq.s32.totalorder %s17, 0
    %p145 = por %p143, %p144
    %s146 = ssub.s32 %s19, %s33
    %p147 = scmp.eq.s32.totalorder %s146, 0
    %s149 = sadd.s32 %s148, 1
    %s150 = scalar_select %p147, %s148, %s149
    %p153 = pneg %p147
    %p154 = scmp.eq.s32.totalorder %s11, 4
    %p155 = por %p153, %p154
    %p156 = scmp.ne.s32.totalorder %s148, %s151
    %p157 = scmp.eq.s32.totalorder %s11, 0
    %p158 = por %p156, %p157
    %p159 = scmp.ne.s32.totalorder %s148, %s151
    %p160 = scmp.eq.s32.totalorder %s16, 4
    %p161 = por %p159, %p160
    %p162 = scmp.ne.s32.totalorder %s151, %s152
    %p163 = scmp.eq.s32.totalorder %s16, 0
    %p164 = por %p162, %p163
    %p165 = scmp.ne.s32.totalorder %s151, %s152
    %p166 = scmp.eq.s32.totalorder %s17, 4
    %p167 = por %p165, %p166
    %p169 = scmp.ne.s32.totalorder %s152, %s168
    %p170 = scmp.eq.s32.totalorder %s17, 0
    %p171 = por %p169, %p170
    %s172 = ssub.s32 %s18, %s37
    %s173 = ssub.s32 %s19, %s33
    %s174 = sor.u32 %s172, %s173
    %p175 = scmp.eq.s32.totalorder %s174, 0
    %s177 = sadd.s32 %s176, 1
    %s178 = scalar_select %p175, %s176, %s177
    %p181 = pneg %p175
    %p182 = scmp.eq.s32.totalorder %s11, 4
    %p183 = por %p181, %p182
    %p184 = scmp.ne.s32.totalorder %s176, %s179
    %p185 = scmp.eq.s32.totalorder %s11, 0
    %p186 = por %p184, %p185
    %p187 = scmp.ne.s32.totalorder %s176, %s179
    %p188 = scmp.eq.s32.totalorder %s16, 4
    %p189 = por %p187, %p188
    %p190 = scmp.ne.s32.totalorder %s179, %s180
    %p191 = scmp.eq.s32.totalorder %s16, 0
    %p192 = por %p190, %p191
    %p193 = scmp.ne.s32.totalorder %s179, %s180
    %p194 = scmp.eq.s32.totalorder %s17, 4
    %p195 = por %p193, %p194
    %p197 = scmp.ne.s32.totalorder %s180, %s196
    %p198 = scmp.eq.s32.totalorder %s17, 0
    %p199 = por %p197, %p198
    %p200 = scmp.le.s32.totalorder 1, %s11
    %p201 = scmp.lt.s32.totalorder %s11, 6
    %p202 = pnand %p200, %p201
    %p203 = pneg %p202
    // Predicated region
    $region9: #{encoder_forward.8} parent=5 // pred_check
      _
    $region10: #{encoder_forward.8} parent=5 // pred_check_branch
      %205 = sbr.rel (%p202) target = $region12
    $region11: #{encoder_forward.8} parent=5 // pred_region
      %s206 = ssub.s32 %s11, 1
      // Predicated region
      $region13: #{encoder_forward.8} parent=11 // pred_check
        %p207 = pneg %p112
      $region14: #{encoder_forward.8} parent=11 // pred_check_branch
        %209 = sbr.rel (%p207) target = $region16
      $region15: #{encoder_forward.8} parent=11 // pred_region
        %p210 = scmp.lt.s32.totalorder %s22, 0
        %s211 = scalar_select %p210, %s22, 0
        %s212 = scalar_lea.vmem %s2, %s211
      $region16: #{encoder_forward.8} parent=11 // pred_fallthru
        _
      // Predicated region
      $region17: #{encoder_forward.8} parent=11 // pred_check
        %p213 = pneg %p138
      $region18: #{encoder_forward.8} parent=11 // pred_check_branch
        %215 = sbr.rel (%p213) target = $region20
      $region19: #{encoder_forward.8} parent=11 // pred_region
        %p216 = scmp.lt.s32.totalorder %s22, 0
        %s217 = scalar_select %p216, %s22, 0
        %s218 = scalar_lea.vmem %s3, %s217
      $region20: #{encoder_forward.8} parent=11 // pred_fallthru
        _
      // Predicated region
      $region21: #{encoder_forward.8} parent=11 // pred_check
        %p219 = pneg %p164
      $region22: #{encoder_forward.8} parent=11 // pred_check_branch
        %221 = sbr.rel (%p219) target = $region24
      $region23: #{encoder_forward.8} parent=11 // pred_region
        %p222 = scmp.lt.s32.totalorder %s22, 0
        %s223 = scalar_select %p222, %s22, 0
        %s224 = scalar_lea.vmem %s4, %s223
      $region24: #{encoder_forward.8} parent=11 // pred_fallthru
        _
    $region12: #{encoder_forward.8} parent=5 // pred_fallthru
      _
    %p225 = scmp.lt.s32.totalorder %s11, 5
    // Predicated region
    $region25: #{encoder_forward.8} parent=5 // pred_check
      %p226 = pneg %p225
    $region26: #{encoder_forward.8} parent=5 // pred_check_branch
      %228 = sbr.rel (%p226) target = $region28
    $region27: #{encoder_forward.8} parent=5 // pred_region
      // Predicated region
      $region29: #{encoder_forward.8} parent=27 // pred_check
        %p229 = pneg %p52
      $region30: #{encoder_forward.8} parent=27 // pred_check_branch
        %231 = sbr.rel (%p229) target = $region32
      $region31: #{encoder_forward.8} parent=27 // pred_region
        %p232 = scmp.lt.s32.totalorder %s18, 0
        %s233 = scalar_select %p232, %s18, 0
        %p234 = scmp.lt.s32.totalorder %s20, 4
        %s235 = scalar_select %p234, %s20, 4
        %s236 = smul.addr %s233, 5
        %s237 = sadd.s32 %s235, %s236
        %s238 = smul.addr %s237, 4
        %s239 = scalar_lea.vmem %s0, %s238
      $region32: #{encoder_forward.8} parent=27 // pred_fallthru
        _
      // Predicated region
      $region33: #{encoder_forward.8} parent=27 // pred_check
        %p240 = pneg %p80
      $region34: #{encoder_forward.8} parent=27 // pred_check_branch
        %242 = sbr.rel (%p240) target = $region36
      $region35: #{encoder_forward.8} parent=27 // pred_region
        %s243 = smul.u32 16, %s20
        %p244 = scmp.lt.s32.totalorder %s243, 79
        %s245 = scalar_select %p244, %s243, 79
        %p246 = scmp.lt.s32.totalorder %s19, 0
        %s247 = scalar_select %p246, %s19, 0
        %s248 = sadd.s32 %s247, %s245
        %s249 = smul.addr %s248, 4
        %s250 = scalar_lea.vmem %s1, %s249
        %s251 = smul.u32 16, %s20
      $region36: #{encoder_forward.8} parent=27 // pred_fallthru
        _
    $region28: #{encoder_forward.8} parent=5 // pred_fallthru
      _
    %p252 = scmp.le.s32.totalorder 1, %s11
    %p253 = scmp.lt.s32.totalorder %s11, 6
    %p254 = pnand %p252, %p253
    %p255 = pneg %p254
    // Predicated region
    $region37: #{encoder_forward.8} parent=5 // pred_check
      _
    $region38: #{encoder_forward.8} parent=5 // pred_check_branch
      %257 = sbr.rel (%p254) target = $region40
    $region39: #{encoder_forward.8} parent=5 // pred_region
      %s258 = ssub.s32 %s11, 1
      %p259 = scmp.lt.s32.totalorder %s21, 0
      %s260 = scalar_select %p259, %s21, 0
      %p261 = scmp.lt.s32.totalorder %s23, 4
      %s262 = scalar_select %p261, %s23, 4
      %s263 = smul.addr %s260, 5
      %s264 = sadd.s32 %s262, %s263
      %s265 = smul.addr %s264, 4
      %s266 = scalar_lea.vmem %s0, %s265
      %p267 = pneg %p58
      %p268 = pneg %p55
      %s269 = smul.u32 16, %s23
      %p270 = scmp.lt.s32.totalorder %s269, 79
      %s271 = scalar_select %p270, %s269, 79
      %p272 = scmp.lt.s32.totalorder %s22, 0
      %s273 = scalar_select %p272, %s22, 0
      %s274 = sadd.s32 %s273, %s271
      %s275 = smul.addr %s274, 4
      %s276 = scalar_lea.vmem %s1, %s275
      %p277 = pneg %p86
      %p278 = pneg %p83
      %p279 = scmp.lt.s32.totalorder %s22, 0
      %s280 = scalar_select %p279, %s22, 0
      %s281 = scalar_lea.vmem %s2, %s280
      %p282 = pneg %p112
      %p283 = pneg %p109
      %p284 = scmp.lt.s32.totalorder %s22, 0
      %s285 = scalar_select %p284, %s22, 0
      %s286 = scalar_lea.vmem %s3, %s285
      %p287 = pneg %p138
      %p288 = pneg %p135
      %p289 = scmp.lt.s32.totalorder %s22, 0
      %s290 = scalar_select %p289, %s22, 0
      %s291 = scalar_lea.vmem %s4, %s290
      %p292 = pneg %p164
      %p293 = pneg %p161
      %p294 = pneg %p192
      %p295 = pneg %p189
      %p296 = scmp.lt.s32.totalorder %s21, 0
      %s297 = scalar_select %p296, %s21, 0
      %p298 = scmp.lt.s32.totalorder %s22, 0
      %s299 = scalar_select %p298, %s22, 0
      %s300 = sadd.s32 %s299, %s297
      %s301 = smul.addr %s300, 4
      %s302 = scalar_lea.vmem %s5, %s301
      %p303 = scmp.lt.s32.totalorder %s21, 0
      %s304 = scalar_select %p303, %s21, 0
      %p305 = scmp.lt.s32.totalorder %s23, 4
      %s306 = scalar_select %p305, %s23, 4
      %s307 = smul.addr %s304, 5
      %s308 = sadd.s32 %s306, %s307
      %s309 = smul.addr %s308, 4
      %s310 = scalar_lea.vmem %s0, %s309
      %s311 = smul.u32 16, %s23
      %p312 = scmp.lt.s32.totalorder %s311, 79
      %s313 = scalar_select %p312, %s311, 79
      %p314 = scmp.lt.s32.totalorder %s22, 0
      %s315 = scalar_select %p314, %s22, 0
      %s316 = sadd.s32 %s315, %s313
      %s317 = smul.addr %s316, 4
      %s318 = scalar_lea.vmem %s1, %s317
      %s319 = smul.u32 16, %s23
      %p320 = scmp.lt.s32.totalorder %s22, 0
      %s321 = scalar_select %p320, %s22, 0
      %s322 = scalar_lea.vmem %s2, %s321
      %p323 = scmp.lt.s32.totalorder %s22, 0
      %s324 = scalar_select %p323, %s22, 0
      %s325 = scalar_lea.vmem %s3, %s324
      %p326 = scmp.lt.s32.totalorder %s22, 0
      %s327 = scalar_select %p326, %s22, 0
      %s328 = scalar_lea.vmem %s4, %s327
      %p329 = scmp.lt.s32.totalorder %s21, 0
      %s330 = scalar_select %p329, %s21, 0
      %p331 = scmp.lt.s32.totalorder %s22, 0
      %s332 = scalar_select %p331, %s22, 0
      %s333 = sadd.s32 %s332, %s330
      %s334 = smul.addr %s333, 4
      %s335 = scalar_lea.vmem %s5, %s334
      %p337 = scmp.eq.s32.totalorder %s23, 0
      // Predicated region
      $region41: #{encoder_forward.8} parent=39 // pred_check
        %p338 = pneg %p337
      $region42: #{encoder_forward.8} parent=39 // pred_check_branch
        %340 = sbr.rel (%p338) target = $region44
      $region43: #{encoder_forward.8} parent=39 // pred_region
        %341 = vst [vmem:[#allocation2] sm:$0xff] 0.0
      $region44: #{encoder_forward.8} parent=39 // pred_fallthru
        _
      %v342 = vld [vmem:[#allocation2] sm:$0xff]
      %v343 = vld [vmem:[%s310] sm:$0xf]
      %v344 = vld [vmem:[%s318] sm:$0xf]
      %v345 = vld [vmem:[%s318 + $0x4] sm:$0xf]
      %v346 = vld [vmem:[%s318 + $0x8] sm:$0xf]
      %v347 = vld [vmem:[%s318 + $0xc] sm:$0xf]
      %v348 = vld [vmem:[%s318 + $0x10] sm:$0xf]
      %v349 = vld [vmem:[%s318 + $0x14] sm:$0xf]
      %v350 = vld [vmem:[%s318 + $0x18] sm:$0xf]
      %v351 = vld [vmem:[%s318 + $0x1c] sm:$0xf]
      %v352 = vld [vmem:[%s318 + $0x20] sm:$0xf]
      %v353 = vld [vmem:[%s318 + $0x24] sm:$0xf]
      %v354 = vld [vmem:[%s318 + $0x28] sm:$0xf]
      %v355 = vld [vmem:[%s318 + $0x2c] sm:$0xf]
      %v356 = vld [vmem:[%s318 + $0x30] sm:$0xf]
      %v357 = vld [vmem:[%s318 + $0x34] sm:$0xf]
      %v358 = vld [vmem:[%s318 + $0x38] sm:$0xf]
      %v359 = vld [vmem:[%s318 + $0x3c] sm:$0xf]
      %v376 = vunpack.c.l.b16 %v344
      %v377 = vunpack.c.l.b16 %v345
      %v378 = vunpack.c.l.b16 %v346
      %v379 = vunpack.c.l.b16 %v347
      %v380 = vunpack.c.l.b16 %v348
      %v381 = vunpack.c.l.b16 %v349
      %v382 = vunpack.c.l.b16 %v350
      %v383 = vunpack.c.l.b16 %v351
      %v384 = vunpack.c.l.b16 %v352
      %v385 = vunpack.c.l.b16 %v353
      %v386 = vunpack.c.l.b16 %v354
      %v387 = vunpack.c.l.b16 %v355
      %v388 = vunpack.c.l.b16 %v356
      %v389 = vunpack.c.l.b16 %v357
      %v390 = vunpack.c.l.b16 %v358
      %v391 = vunpack.c.l.b16 %v359
      %v392 = vpack.c.b16 %v377, %v376
      %v393 = vpack.c.b16 %v379, %v378
      %v394 = vpack.c.b16 %v381, %v380
      %v395 = vpack.c.b16 %v383, %v382
      %v396 = vpack.c.b16 %v385, %v384
      %v397 = vpack.c.b16 %v387, %v386
      %v398 = vpack.c.b16 %v389, %v388
      %v399 = vpack.c.b16 %v391, %v390
      %408 = vmatprep.subr.bf16.mxu0 0
      %409 = vmatpush1.bf16.msra.mxu0 %v392
      %410 = vmatprep.subr.bf16.mxu0 0
      %411 = vmatpush1.bf16.msra.mxu0 %v393
      %412 = vmatprep.subr.bf16.mxu0 0
      %413 = vmatpush1.bf16.msra.mxu0 %v394
      %414 = vmatprep.subr.bf16.mxu0 0
      %415 = vmatpush1.bf16.msra.mxu0 %v395
      %416 = vmatprep.subr.bf16.mxu0 0
      %417 = vmatpush1.bf16.msra.mxu0 %v396
      %418 = vmatprep.subr.bf16.mxu0 0
      %419 = vmatpush1.bf16.msra.mxu0 %v397
      %420 = vmatprep.subr.bf16.mxu0 0
      %421 = vmatpush1.bf16.msra.mxu0 %v398
      %422 = vmatprep.subr.bf16.mxu0 0
      %423 = vmatpush1.bf16.msra.mxu0 %v399
      %424 = vmatprep.subr.bf16.mxu0 0
      %425 = vmatpush1.bf16.msra.mxu0 0
      %426 = vmatprep.subr.bf16.mxu0 0
      %427 = vmatpush1.bf16.msra.mxu0 0
      %428 = vmatprep.subr.bf16.mxu0 0
      %429 = vmatpush1.bf16.msra.mxu0 0
      %430 = vmatprep.subr.bf16.mxu0 0
      %431 = vmatpush1.bf16.msra.mxu0 0
      %432 = vmatprep.subr.bf16.mxu0 0
      %433 = vmatpush1.bf16.msra.mxu0 0
      %434 = vmatprep.subr.bf16.mxu0 0
      %435 = vmatpush1.bf16.msra.mxu0 0
      %436 = vmatprep.subr.bf16.mxu0 0
      %437 = vmatpush1.bf16.msra.mxu0 0
      %438 = vmatprep.subr.bf16.mxu0 0
      %439 = vmatpush1.bf16.msra.mxu0 0
      %440 = vmatprep.mubr.bf16.mxu0 0
      %441 = vmatmul.mubr.bf16.gmra.mrb[0].mxu0 %v343
      %v442 = vpop.f32.mrb[0].mxu0
      %v443 = vadd.f32 0.0, %v442
      %v444 = vpop.f32.mrb[0].mxu0
      %v445 = vpop.f32.mrb[0].mxu0
      %v446 = vpop.f32.mrb[0].mxu0
      %447 = vdwg.mxu0
      %v448 = vadd.f32 %v342, %v443
      %449 = vst [vmem:[#allocation2] sm:$0xff] %v448
      %p450 = scmp.eq.s32.totalorder %s23, 4
      // Predicated region
      $region45: #{encoder_forward.8} parent=39 // pred_check
        %p451 = pneg %p450
      $region46: #{encoder_forward.8} parent=39 // pred_check_branch
        %453 = sbr.rel (%p451) target = $region48
      $region47: #{encoder_forward.8} parent=39 // pred_region
        %v454 = vld [vmem:[#allocation2] sm:$0xff]
        %v455 = vld [vmem:[%s322] sm:$0x1]
        %v457 = vlaneseq
        %v458 = vshrl.u32 %v457, 7
        %v459 = vsub.s32 0, %v458
        %v460 = vrot.slane %v455, %v459
        %v462 = vadd.f32 %v454, %v460
        %vm463 = vcmp.gt.f32.partialorder %v462, 0.0
        %v464 = vmul.f32 %v462, 0.2
        %v465 = vsel %vm463, %v462, %v464
        %v466 = vld [vmem:[%s325] sm:$0x1]
        %v468 = vlaneseq
        %v469 = vshrl.u32 %v468, 7
        %v470 = vsub.s32 0, %v469
        %v471 = vrot.slane %v466, %v470
        %v473 = vmul.f32 %v465, %v471
        %v474 = vld [vmem:[%s328] sm:$0x1]
        %v476 = vlaneseq
        %v477 = vshrl.u32 %v476, 7
        %v478 = vsub.s32 0, %v477
        %v479 = vrot.slane %v474, %v478
        %v481 = vadd.f32 %v473, %v479
        %v482 = vpack.c.bf16 %v481, %v481
        %483 = vst [vmem:[%s335] sm:$0xf] %v482
      $region48: #{encoder_forward.8} parent=39 // pred_fallthru
        _
      %p484 = scmp.lt.s32.totalorder %s21, 0
      %s485 = scalar_select %p484, %s21, 0
      %p486 = scmp.lt.s32.totalorder %s22, 0
      %s487 = scalar_select %p486, %s22, 0
      %s488 = sadd.s32 %s487, %s485
      %s489 = smul.addr %s488, 4
      %s490 = scalar_lea.vmem %s5, %s489
      // Predicated region
      $region49: #{encoder_forward.8} parent=39 // pred_check
        %p491 = pneg %p189
      $region50: #{encoder_forward.8} parent=39 // pred_check_branch
        %493 = sbr.rel (%p491) target = $region52
      $region51: #{encoder_forward.8} parent=39 // pred_region
        _
      $region52: #{encoder_forward.8} parent=39 // pred_fallthru
        _
      // Predicated region
      $region53: #{encoder_forward.8} parent=39 // pred_check
        %p494 = pneg %p189
      $region54: #{encoder_forward.8} parent=39 // pred_check_branch
        %496 = sbr.rel (%p494) target = $region56
      $region55: #{encoder_forward.8} parent=39 // pred_region
        %p497 = scmp.lt.s32.totalorder %s21, 0
        %s498 = scalar_select %p497, %s21, 0
        %p499 = scmp.lt.s32.totalorder %s22, 0
        %s500 = scalar_select %p499, %s22, 0
        %s501 = sadd.s32 %s500, %s498
        %s502 = smul.addr %s501, 4
        %s503 = scalar_lea.vmem %s5, %s502
      $region56: #{encoder_forward.8} parent=39 // pred_fallthru
        _
    $region40: #{encoder_forward.8} parent=5 // pred_fallthru
      _
    %p504 = scmp.le.s32.totalorder 2, %s11
    // Predicated region
    $region57: #{encoder_forward.8} parent=5 // pred_check
      %p505 = pneg %p504
    $region58: #{encoder_forward.8} parent=5 // pred_check_branch
      %507 = sbr.rel (%p505) target = $region60
    $region59: #{encoder_forward.8} parent=5 // pred_region
      %s508 = ssub.s32 %s11, 2
    $region60: #{encoder_forward.8} parent=5 // pred_fallthru
      _
  $region6: #{encoder_forward.8} parent=0 // loop_footer
    %s15 = sadd.s32 1, %s11
  $region7: #{encoder_forward.8} parent=0 // loop_footer_branch
    %10 = sbr.rel target = $region3
  $region8: #{encoder_forward.8} parent=0 // loop_exit
    _

// kernel: encoder_forward.7
$region0: #{encoder_forward.7}
  #allocation0 [shape = 'u32[]', space=smem, size = 0x4, offset = 0x4, fixed_abs, tag = 'smem constant byte address 0x4 - core index']
  #allocation1 [shape = 'u32[144,128]{1,0:T(1,128)}', space=vmem, size = 0x12000, scoped, tag = 'internal scratch']
  #allocation2 [shape = 'f32[8,128]{1,0:T(8,128)}', space=vmem, size = 0x1000, scoped, tag = 'scratch operand']
  %s0 = inlined_call_operand.vmem [shape: bf16[8,384], index: 0, kind: input, shape index: {}]
  %s1 = inlined_call_operand.vmem [shape: bf16[384,128], index: 1, kind: input, shape index: {}]
  %s2 = inlined_call_operand.vmem [shape: f32[1,128], index: 2, kind: input, shape index: {}]
  %s3 = inlined_call_operand.vmem [shape: f32[1,128], index: 3, kind: input, shape index: {}]
  %s4 = inlined_call_operand.vmem [shape: f32[1,128], index: 4, kind: input, shape index: {}]
  %s5 = inlined_call_operand.vmem [shape: bf16[8,128], index: 5, kind: output, shape index: {}]
  %s6 = sld [smem:[#allocation0]]
  $region38: #{encoder_forward.7} parent=0
    _
  %s8 = ssub.s32 1, %s6
  %s9 = scalar_select 0, %s8, %s6
  // Predicated region
  $region2: #{encoder_forward.7} parent=0 // pred_check
    _
  $region3: #{encoder_forward.7} parent=0 // pred_check_branch
    %11 = sbr.rel (0) target = $region5
  $region4: #{encoder_forward.7} parent=0 // pred_region
    _
  $region5: #{encoder_forward.7} parent=0 // pred_fallthru
    _
  // Predicated region
  $region6: #{encoder_forward.7} parent=0 // pred_check
    _
  $region7: #{encoder_forward.7} parent=0 // pred_check_branch
    %13 = sbr.rel (0) target = $region9
  $region8: #{encoder_forward.7} parent=0 // pred_region
    _
  $region9: #{encoder_forward.7} parent=0 // pred_fallthru
    _
  // Predicated region
  $region10: #{encoder_forward.7} parent=0 // pred_check
    _
  $region11: #{encoder_forward.7} parent=0 // pred_check_branch
    %15 = sbr.rel (0) target = $region13
  $region12: #{encoder_forward.7} parent=0 // pred_region
    _
  $region13: #{encoder_forward.7} parent=0 // pred_fallthru
    _
  // Predicated region
  $region14: #{encoder_forward.7} parent=0 // pred_check
    _
  $region15: #{encoder_forward.7} parent=0 // pred_check_branch
    %17 = sbr.rel (0) target = $region17
  $region16: #{encoder_forward.7} parent=0 // pred_region
    _
  $region17: #{encoder_forward.7} parent=0 // pred_fallthru
    _
  // Predicated region
  $region18: #{encoder_forward.7} parent=0 // pred_check
    _
  $region19: #{encoder_forward.7} parent=0 // pred_check_branch
    %19 = sbr.rel (0) target = $region21
  $region20: #{encoder_forward.7} parent=0 // pred_region
    _
  $region21: #{encoder_forward.7} parent=0 // pred_fallthru
    _
  %p21 = scmp.eq.s32.totalorder 0, 0
  // Predicated region
  $region22: #{encoder_forward.7} parent=0 // pred_check
    %p22 = pneg %p21
  $region23: #{encoder_forward.7} parent=0 // pred_check_branch
    %24 = sbr.rel (%p22) target = $region25
  $region24: #{encoder_forward.7} parent=0 // pred_region
    %25 = vst [vmem:[#allocation2] sm:$0xff] 0.0
  $region25: #{encoder_forward.7} parent=0 // pred_fallthru
    _
  %v26 = vld [vmem:[#allocation2] sm:$0xff]
  %v27 = vld [vmem:[%s0] sm:$0xff]
  %v28 = vld [vmem:[%s0 + $0x8] sm:$0xf]
  %v29 = vld [vmem:[%s1] sm:$0xf]
  %v30 = vld [vmem:[%s1 + $0x4] sm:$0xf]
  %v31 = vld [vmem:[%s1 + $0x8] sm:$0xf]
  %v32 = vld [vmem:[%s1 + $0xc] sm:$0xf]
  %v33 = vld [vmem:[%s1 + $0x10] sm:$0xf]
  %v34 = vld [vmem:[%s1 + $0x14] sm:$0xf]
  %v35 = vld [vmem:[%s1 + $0x18] sm:$0xf]
  %v36 = vld [vmem:[%s1 + $0x1c] sm:$0xf]
  %v37 = vld [vmem:[%s1 + $0x20] sm:$0xf]
  %v38 = vld [vmem:[%s1 + $0x24] sm:$0xf]
  %v39 = vld [vmem:[%s1 + $0x28] sm:$0xf]
  %v40 = vld [vmem:[%s1 + $0x2c] sm:$0xf]
  %v41 = vld [vmem:[%s1 + $0x30] sm:$0xf]
  %v42 = vld [vmem:[%s1 + $0x34] sm:$0xf]
  %v43 = vld [vmem:[%s1 + $0x38] sm:$0xf]
  %v44 = vld [vmem:[%s1 + $0x3c] sm:$0xf]
  %v45 = vld [vmem:[%s1 + $0x40] sm:$0xf]
  %v46 = vld [vmem:[%s1 + $0x44] sm:$0xf]
  %v47 = vld [vmem:[%s1 + $0x48] sm:$0xf]
  %v48 = vld [vmem:[%s1 + $0x4c] sm:$0xf]
  %v49 = vld [vmem:[%s1 + $0x50] sm:$0xf]
  %v50 = vld [vmem:[%s1 + $0x54] sm:$0xf]
  %v51 = vld [vmem:[%s1 + $0x58] sm:$0xf]
  %v52 = vld [vmem:[%s1 + $0x5c] sm:$0xf]
  %v53 = vld [vmem:[%s1 + $0x60] sm:$0xf]
  %v54 = vld [vmem:[%s1 + $0x64] sm:$0xf]
  %v55 = vld [vmem:[%s1 + $0x68] sm:$0xf]
  %v56 = vld [vmem:[%s1 + $0x6c] sm:$0xf]
  %v57 = vld [vmem:[%s1 + $0x70] sm:$0xf]
  %v58 = vld [vmem:[%s1 + $0x74] sm:$0xf]
  %v59 = vld [vmem:[%s1 + $0x78] sm:$0xf]
  %v60 = vld [vmem:[%s1 + $0x7c] sm:$0xf]
  %v61 = vld [vmem:[%s1 + $0x80] sm:$0xf]
  %v62 = vld [vmem:[%s1 + $0x84] sm:$0xf]
  %v63 = vld [vmem:[%s1 + $0x88] sm:$0xf]
  %v64 = vld [vmem:[%s1 + $0x8c] sm:$0xf]
  %v65 = vld [vmem:[%s1 + $0x90] sm:$0xf]
  %v66 = vld [vmem:[%s1 + $0x94] sm:$0xf]
  %v67 = vld [vmem:[%s1 + $0x98] sm:$0xf]
  %v68 = vld [vmem:[%s1 + $0x9c] sm:$0xf]
  %v69 = vld [vmem:[%s1 + $0xa0] sm:$0xf]
  %v70 = vld [vmem:[%s1 + $0xa4] sm:$0xf]
  %v71 = vld [vmem:[%s1 + $0xa8] sm:$0xf]
  %v72 = vld [vmem:[%s1 + $0xac] sm:$0xf]
  %v73 = vld [vmem:[%s1 + $0xb0] sm:$0xf]
  %v74 = vld [vmem:[%s1 + $0xb4] sm:$0xf]
  %v75 = vld [vmem:[%s1 + $0xb8] sm:$0xf]
  %v76 = vld [vmem:[%s1 + $0xbc] sm:$0xf]
  %v79 = vunpack.c.l.b16 %v27
  %v80 = vunpack.c.h.b16 %v27
  %v81 = vunpack.c.l.b16 %v28
  %v82 = vpack.c.b16 %v79, %v79
  %v83 = vpack.c.b16 %v80, %v80
  %v84 = vpack.c.b16 %v81, %v81
  %v136 = vunpack.c.l.b16 %v29
  %v137 = vunpack.c.l.b16 %v30
  %v138 = vunpack.c.l.b16 %v31
  %v139 = vunpack.c.l.b16 %v32
  %v140 = vunpack.c.l.b16 %v33
  %v141 = vunpack.c.l.b16 %v34
  %v142 = vunpack.c.l.b16 %v35
  %v143 = vunpack.c.l.b16 %v36
  %v144 = vunpack.c.l.b16 %v37
  %v145 = vunpack.c.l.b16 %v38
  %v146 = vunpack.c.l.b16 %v39
  %v147 = vunpack.c.l.b16 %v40
  %v148 = vunpack.c.l.b16 %v41
  %v149 = vunpack.c.l.b16 %v42
  %v150 = vunpack.c.l.b16 %v43
  %v151 = vunpack.c.l.b16 %v44
  %v152 = vunpack.c.l.b16 %v45
  %v153 = vunpack.c.l.b16 %v46
  %v154 = vunpack.c.l.b16 %v47
  %v155 = vunpack.c.l.b16 %v48
  %v156 = vunpack.c.l.b16 %v49
  %v157 = vunpack.c.l.b16 %v50
  %v158 = vunpack.c.l.b16 %v51
  %v159 = vunpack.c.l.b16 %v52
  %v160 = vunpack.c.l.b16 %v53
  %v161 = vunpack.c.l.b16 %v54
  %v162 = vunpack.c.l.b16 %v55
  %v163 = vunpack.c.l.b16 %v56
  %v164 = vunpack.c.l.b16 %v57
  %v165 = vunpack.c.l.b16 %v58
  %v166 = vunpack.c.l.b16 %v59
  %v167 = vunpack.c.l.b16 %v60
  %v168 = vunpack.c.l.b16 %v61
  %v169 = vunpack.c.l.b16 %v62
  %v170 = vunpack.c.l.b16 %v63
  %v171 = vunpack.c.l.b16 %v64
  %v172 = vunpack.c.l.b16 %v65
  %v173 = vunpack.c.l.b16 %v66
  %v174 = vunpack.c.l.b16 %v67
  %v175 = vunpack.c.l.b16 %v68
  %v176 = vunpack.c.l.b16 %v69
  %v177 = vunpack.c.l.b16 %v70
  %v178 = vunpack.c.l.b16 %v71
  %v179 = vunpack.c.l.b16 %v72
  %v180 = vunpack.c.l.b16 %v73
  %v181 = vunpack.c.l.b16 %v74
  %v182 = vunpack.c.l.b16 %v75
  %v183 = vunpack.c.l.b16 %v76
  %v184 = vpack.c.b16 %v137, %v136
  %v185 = vpack.c.b16 %v139, %v138
  %v186 = vpack.c.b16 %v141, %v140
  %v187 = vpack.c.b16 %v143, %v142
  %v188 = vpack.c.b16 %v145, %v144
  %v189 = vpack.c.b16 %v147, %v146
  %v190 = vpack.c.b16 %v149, %v148
  %v191 = vpack.c.b16 %v151, %v150
  %v192 = vpack.c.b16 %v153, %v152
  %v193 = vpack.c.b16 %v155, %v154
  %v194 = vpack.c.b16 %v157, %v156
  %v195 = vpack.c.b16 %v159, %v158
  %v196 = vpack.c.b16 %v161, %v160
  %v197 = vpack.c.b16 %v163, %v162
  %v198 = vpack.c.b16 %v165, %v164
  %v199 = vpack.c.b16 %v167, %v166
  %v200 = vpack.c.b16 %v169, %v168
  %v201 = vpack.c.b16 %v171, %v170
  %v202 = vpack.c.b16 %v173, %v172
  %v203 = vpack.c.b16 %v175, %v174
  %v204 = vpack.c.b16 %v177, %v176
  %v205 = vpack.c.b16 %v179, %v178
  %v206 = vpack.c.b16 %v181, %v180
  %v207 = vpack.c.b16 %v183, %v182
  %232 = vmatprep.subr.bf16.mxu0 0
  %233 = vmatpush1.bf16.msra.mxu0 %v184
  %234 = vmatprep.subr.bf16.mxu0 0
  %235 = vmatpush1.bf16.msra.mxu0 %v185
  %236 = vmatprep.subr.bf16.mxu0 0
  %237 = vmatpush1.bf16.msra.mxu0 %v186
  %238 = vmatprep.subr.bf16.mxu0 0
  %239 = vmatpush1.bf16.msra.mxu0 %v187
  %240 = vmatprep.subr.bf16.mxu0 0
  %241 = vmatpush1.bf16.msra.mxu0 %v188
  %242 = vmatprep.subr.bf16.mxu0 0
  %243 = vmatpush1.bf16.msra.mxu0 %v189
  %244 = vmatprep.subr.bf16.mxu0 0
  %245 = vmatpush1.bf16.msra.mxu0 %v190
  %246 = vmatprep.subr.bf16.mxu0 0
  %247 = vmatpush1.bf16.msra.mxu0 %v191
  %248 = vmatprep.subr.bf16.mxu0 0
  %249 = vmatpush1.bf16.msra.mxu0 %v192
  %250 = vmatprep.subr.bf16.mxu0 0
  %251 = vmatpush1.bf16.msra.mxu0 %v193
  %252 = vmatprep.subr.bf16.mxu0 0
  %253 = vmatpush1.bf16.msra.mxu0 %v194
  %254 = vmatprep.subr.bf16.mxu0 0
  %255 = vmatpush1.bf16.msra.mxu0 %v195
  %256 = vmatprep.subr.bf16.mxu0 0
  %257 = vmatpush1.bf16.msra.mxu0 %v196
  %258 = vmatprep.subr.bf16.mxu0 0
  %259 = vmatpush1.bf16.msra.mxu0 %v197
  %260 = vmatprep.subr.bf16.mxu0 0
  %261 = vmatpush1.bf16.msra.mxu0 %v198
  %262 = vmatprep.subr.bf16.mxu0 0
  %263 = vmatpush1.bf16.msra.mxu0 %v199
  %264 = vmatprep.mubr.bf16.mxu0 %v83
  %265 = vmatmul.mubr.bf16.gmra.mrb[0].mxu0 %v82
  %v266 = vpop.f32.mrb[0].mxu0
  %v267 = vadd.f32 0.0, %v266
  %v268 = vpop.f32.mrb[0].mxu0
  %v269 = vpop.f32.mrb[0].mxu0
  %v270 = vpop.f32.mrb[0].mxu0
  %271 = vdwg.mxu0
  %272 = vmatprep.subr.bf16.mxu0 0
  %273 = vmatpush1.bf16.msra.mxu0 %v200
  %274 = vmatprep.subr.bf16.mxu0 0
  %275 = vmatpush1.bf16.msra.mxu0 %v201
  %276 = vmatprep.subr.bf16.mxu0 0
  %277 = vmatpush1.bf16.msra.mxu0 %v202
  %278 = vmatprep.subr.bf16.mxu0 0
  %279 = vmatpush1.bf16.msra.mxu0 %v203
  %280 = vmatprep.subr.bf16.mxu0 0
  %281 = vmatpush1.bf16.msra.mxu0 %v204
  %282 = vmatprep.subr.bf16.mxu0 0
  %283 = vmatpush1.bf16.msra.mxu0 %v205
  %284 = vmatprep.subr.bf16.mxu0 0
  %285 = vmatpush1.bf16.msra.mxu0 %v206
  %286 = vmatprep.subr.bf16.mxu0 0
  %287 = vmatpush1.bf16.msra.mxu0 %v207
  %288 = vmatprep.subr.bf16.mxu0 0
  %289 = vmatpush1.bf16.msra.mxu0 0
  %290 = vmatprep.subr.bf16.mxu0 0
  %291 = vmatpush1.bf16.msra.mxu0 0
  %292 = vmatprep.subr.bf16.mxu0 0
  %293 = vmatpush1.bf16.msra.mxu0 0
  %294 = vmatprep.subr.bf16.mxu0 0
  %295 = vmatpush1.bf16.msra.mxu0 0
  %296 = vmatprep.subr.bf16.mxu0 0
  %297 = vmatpush1.bf16.msra.mxu0 0
  %298 = vmatprep.subr.bf16.mxu0 0
  %299 = vmatpush1.bf16.msra.mxu0 0
  %300 = vmatprep.subr.bf16.mxu0 0
  %301 = vmatpush1.bf16.msra.mxu0 0
  %302 = vmatprep.subr.bf16.mxu0 0
  %303 = vmatpush1.bf16.msra.mxu0 0
  %304 = vmatprep.mubr.bf16.mxu0 0
  %305 = vmatmul.mubr.bf16.gmra.mrb[0].mxu0 %v84
  %v306 = vpop.f32.mrb[0].mxu0
  %v307 = vadd.f32 %v267, %v306
  %v308 = vpop.f32.mrb[0].mxu0
  %v309 = vpop.f32.mrb[0].mxu0
  %v310 = vpop.f32.mrb[0].mxu0
  %311 = vdwg.mxu0
  %v312 = vadd.f32 %v26, %v307
  %313 = vst [vmem:[#allocation2] sm:$0xff] %v312
  // Predicated region
  $region26: #{encoder_forward.7} parent=0 // pred_check
    %p314 = pneg %p21
  $region27: #{encoder_forward.7} parent=0 // pred_check_branch
    %316 = sbr.rel (%p314) target = $region29
  $region28: #{encoder_forward.7} parent=0 // pred_region
    %v317 = vld [vmem:[#allocation2] sm:$0xff]
    %v318 = vld [vmem:[%s2] sm:$0x1]
    %v320 = vlaneseq
    %v321 = vshrl.u32 %v320, 7
    %v322 = vsub.s32 0, %v321
    %v323 = vrot.slane %v318, %v322
    %v325 = vadd.f32 %v317, %v323
    %vm326 = vcmp.gt.f32.partialorder %v325, 0.0
    %v327 = vmul.f32 %v325, 0.2
    %v328 = vsel %vm326, %v325, %v327
    %v329 = vld [vmem:[%s3] sm:$0x1]
    %v331 = vlaneseq
    %v332 = vshrl.u32 %v331, 7
    %v333 = vsub.s32 0, %v332
    %v334 = vrot.slane %v329, %v333
    %v336 = vmul.f32 %v328, %v334
    %v337 = vld [vmem:[%s4] sm:$0x1]
    %v339 = vlaneseq
    %v340 = vshrl.u32 %v339, 7
    %v341 = vsub.s32 0, %v340
    %v342 = vrot.slane %v337, %v341
    %v344 = vadd.f32 %v336, %v342
    %v345 = vpack.c.bf16 %v344, %v344
    %346 = vst [vmem:[%s5] sm:$0xf] %v345
  $region29: #{encoder_forward.7} parent=0 // pred_fallthru
    _
  // Predicated region
  $region30: #{encoder_forward.7} parent=0 // pred_check
    _
  $region31: #{encoder_forward.7} parent=0 // pred_check_branch
    %348 = sbr.rel (0) target = $region33
  $region32: #{encoder_forward.7} parent=0 // pred_region
    _
  $region33: #{encoder_forward.7} parent=0 // pred_fallthru
    _
  // Predicated region
  $region34: #{encoder_forward.7} parent=0 // pred_check
    _
  $region35: #{encoder_forward.7} parent=0 // pred_check_branch
    %350 = sbr.rel (0) target = $region37
  $region36: #{encoder_forward.7} parent=0 // pred_region
    _
  $region37: #{encoder_forward.7} parent=0 // pred_fallthru
    _

// kernel: encoder_forward.9
$region0: #{encoder_forward.9}
  #allocation0 [shape = 'u32[]', space=smem, size = 0x4, offset = 0x4, fixed_abs, tag = 'smem constant byte address 0x4 - core index']
  #allocation1 [shape = 'u32[144,128]{1,0:T(1,128)}', space=vmem, size = 0x12000, scoped, tag = 'internal scratch']
  #allocation2 [shape = 'f32[8,128]{1,0:T(8,128)}', space=vmem, size = 0x1000, scoped, tag = 'scratch operand']
  %s0 = inlined_call_operand.vmem [shape: bf16[8,128], index: 0, kind: input, shape index: {}]
  %s1 = inlined_call_operand.vmem [shape: bf16[128,128], index: 1, kind: input, shape index: {}]
  %s2 = inlined_call_operand.vmem [shape: f32[1,128], index: 2, kind: input, shape index: {}]
  %s3 = inlined_call_operand.vmem [shape: f32[1,128], index: 3, kind: input, shape index: {}]
  %s4 = inlined_call_operand.vmem [shape: f32[1,128], index: 4, kind: input, shape index: {}]
  %s5 = inlined_call_operand.vmem [shape: f32[8,128], index: 5, kind: output, shape index: {}]
  %s6 = sld [smem:[#allocation0]]
  $region38: #{encoder_forward.9} parent=0
    _
  %s8 = ssub.s32 1, %s6
  %s9 = scalar_select 0, %s8, %s6
  // Predicated region
  $region2: #{encoder_forward.9} parent=0 // pred_check
    _
  $region3: #{encoder_forward.9} parent=0 // pred_check_branch
    %11 = sbr.rel (0) target = $region5
  $region4: #{encoder_forward.9} parent=0 // pred_region
    _
  $region5: #{encoder_forward.9} parent=0 // pred_fallthru
    _
  // Predicated region
  $region6: #{encoder_forward.9} parent=0 // pred_check
    _
  $region7: #{encoder_forward.9} parent=0 // pred_check_branch
    %13 = sbr.rel (0) target = $region9
  $region8: #{encoder_forward.9} parent=0 // pred_region
    _
  $region9: #{encoder_forward.9} parent=0 // pred_fallthru
    _
  // Predicated region
  $region10: #{encoder_forward.9} parent=0 // pred_check
    _
  $region11: #{encoder_forward.9} parent=0 // pred_check_branch
    %15 = sbr.rel (0) target = $region13
  $region12: #{encoder_forward.9} parent=0 // pred_region
    _
  $region13: #{encoder_forward.9} parent=0 // pred_fallthru
    _
  // Predicated region
  $region14: #{encoder_forward.9} parent=0 // pred_check
    _
  $region15: #{encoder_forward.9} parent=0 // pred_check_branch
    %17 = sbr.rel (0) target = $region17
  $region16: #{encoder_forward.9} parent=0 // pred_region
    _
  $region17: #{encoder_forward.9} parent=0 // pred_fallthru
    _
  // Predicated region
  $region18: #{encoder_forward.9} parent=0 // pred_check
    _
  $region19: #{encoder_forward.9} parent=0 // pred_check_branch
    %19 = sbr.rel (0) target = $region21
  $region20: #{encoder_forward.9} parent=0 // pred_region
    _
  $region21: #{encoder_forward.9} parent=0 // pred_fallthru
    _
  %p21 = scmp.eq.s32.totalorder 0, 0
  // Predicated region
  $region22: #{encoder_forward.9} parent=0 // pred_check
    %p22 = pneg %p21
  $region23: #{encoder_forward.9} parent=0 // pred_check_branch
    %24 = sbr.rel (%p22) target = $region25
  $region24: #{encoder_forward.9} parent=0 // pred_region
    %25 = vst [vmem:[#allocation2] sm:$0xff] 0.0
  $region25: #{encoder_forward.9} parent=0 // pred_fallthru
    _
  %v26 = vld [vmem:[#allocation2] sm:$0xff]
  %v27 = vld [vmem:[%s0] sm:$0xf]
  %v28 = vld [vmem:[%s1] sm:$0xf]
  %v29 = vld [vmem:[%s1 + $0x4] sm:$0xf]
  %v30 = vld [vmem:[%s1 + $0x8] sm:$0xf]
  %v31 = vld [vmem:[%s1 + $0xc] sm:$0xf]
  %v32 = vld [vmem:[%s1 + $0x10] sm:$0xf]
  %v33 = vld [vmem:[%s1 + $0x14] sm:$0xf]
  %v34 = vld [vmem:[%s1 + $0x18] sm:$0xf]
  %v35 = vld [vmem:[%s1 + $0x1c] sm:$0xf]
  %v36 = vld [vmem:[%s1 + $0x20] sm:$0xf]
  %v37 = vld [vmem:[%s1 + $0x24] sm:$0xf]
  %v38 = vld [vmem:[%s1 + $0x28] sm:$0xf]
  %v39 = vld [vmem:[%s1 + $0x2c] sm:$0xf]
  %v40 = vld [vmem:[%s1 + $0x30] sm:$0xf]
  %v41 = vld [vmem:[%s1 + $0x34] sm:$0xf]
  %v42 = vld [vmem:[%s1 + $0x38] sm:$0xf]
  %v43 = vld [vmem:[%s1 + $0x3c] sm:$0xf]
  %v60 = vunpack.c.l.b16 %v28
  %v61 = vunpack.c.l.b16 %v29
  %v62 = vunpack.c.l.b16 %v30
  %v63 = vunpack.c.l.b16 %v31
  %v64 = vunpack.c.l.b16 %v32
  %v65 = vunpack.c.l.b16 %v33
  %v66 = vunpack.c.l.b16 %v34
  %v67 = vunpack.c.l.b16 %v35
  %v68 = vunpack.c.l.b16 %v36
  %v69 = vunpack.c.l.b16 %v37
  %v70 = vunpack.c.l.b16 %v38
  %v71 = vunpack.c.l.b16 %v39
  %v72 = vunpack.c.l.b16 %v40
  %v73 = vunpack.c.l.b16 %v41
  %v74 = vunpack.c.l.b16 %v42
  %v75 = vunpack.c.l.b16 %v43
  %v76 = vpack.c.b16 %v61, %v60
  %v77 = vpack.c.b16 %v63, %v62
  %v78 = vpack.c.b16 %v65, %v64
  %v79 = vpack.c.b16 %v67, %v66
  %v80 = vpack.c.b16 %v69, %v68
  %v81 = vpack.c.b16 %v71, %v70
  %v82 = vpack.c.b16 %v73, %v72
  %v83 = vpack.c.b16 %v75, %v74
  %92 = vmatprep.subr.bf16.mxu0 0
  %93 = vmatpush1.bf16.msra.mxu0 %v76
  %94 = vmatprep.subr.bf16.mxu0 0
  %95 = vmatpush1.bf16.msra.mxu0 %v77
  %96 = vmatprep.subr.bf16.mxu0 0
  %97 = vmatpush1.bf16.msra.mxu0 %v78
  %98 = vmatprep.subr.bf16.mxu0 0
  %99 = vmatpush1.bf16.msra.mxu0 %v79
  %100 = vmatprep.subr.bf16.mxu0 0
  %101 = vmatpush1.bf16.msra.mxu0 %v80
  %102 = vmatprep.subr.bf16.mxu0 0
  %103 = vmatpush1.bf16.msra.mxu0 %v81
  %104 = vmatprep.subr.bf16.mxu0 0
  %105 = vmatpush1.bf16.msra.mxu0 %v82
  %106 = vmatprep.subr.bf16.mxu0 0
  %107 = vmatpush1.bf16.msra.mxu0 %v83
  %108 = vmatprep.subr.bf16.mxu0 0
  %109 = vmatpush1.bf16.msra.mxu0 0
  %110 = vmatprep.subr.bf16.mxu0 0
  %111 = vmatpush1.bf16.msra.mxu0 0
  %112 = vmatprep.subr.bf16.mxu0 0
  %113 = vmatpush1.bf16.msra.mxu0 0
  %114 = vmatprep.subr.bf16.mxu0 0
  %115 = vmatpush1.bf16.msra.mxu0 0
  %116 = vmatprep.subr.bf16.mxu0 0
  %117 = vmatpush1.bf16.msra.mxu0 0
  %118 = vmatprep.subr.bf16.mxu0 0
  %119 = vmatpush1.bf16.msra.mxu0 0
  %120 = vmatprep.subr.bf16.mxu0 0
  %121 = vmatpush1.bf16.msra.mxu0 0
  %122 = vmatprep.subr.bf16.mxu0 0
  %123 = vmatpush1.bf16.msra.mxu0 0
  %124 = vmatprep.mubr.bf16.mxu0 0
  %125 = vmatmul.mubr.bf16.gmra.mrb[0].mxu0 %v27
  %v126 = vpop.f32.mrb[0].mxu0
  %v127 = vadd.f32 0.0, %v126
  %v128 = vpop.f32.mrb[0].mxu0
  %v129 = vpop.f32.mrb[0].mxu0
  %v130 = vpop.f32.mrb[0].mxu0
  %131 = vdwg.mxu0
  %v132 = vadd.f32 %v26, %v127
  %133 = vst [vmem:[#allocation2] sm:$0xff] %v132
  // Predicated region
  $region26: #{encoder_forward.9} parent=0 // pred_check
    %p134 = pneg %p21
  $region27: #{encoder_forward.9} parent=0 // pred_check_branch
    %136 = sbr.rel (%p134) target = $region29
  $region28: #{encoder_forward.9} parent=0 // pred_region
    %v137 = vld [vmem:[#allocation2] sm:$0xff]
    %v138 = vld [vmem:[%s2] sm:$0x1]
    %v140 = vlaneseq
    %v141 = vshrl.u32 %v140, 7
    %v142 = vsub.s32 0, %v141
    %v143 = vrot.slane %v138, %v142
    %v145 = vadd.f32 %v137, %v143
    %v146 = vld [vmem:[%s3] sm:$0x1]
    %v148 = vlaneseq
    %v149 = vshrl.u32 %v148, 7
    %v150 = vsub.s32 0, %v149
    %v151 = vrot.slane %v146, %v150
    %v153 = vmul.f32 %v145, %v151
    %v154 = vld [vmem:[%s4] sm:$0x1]
    %v156 = vlaneseq
    %v157 = vshrl.u32 %v156, 7
    %v158 = vsub.s32 0, %v157
    %v159 = vrot.slane %v154, %v158
    %v161 = vadd.f32 %v153, %v159
    %162 = vst [vmem:[%s5] sm:$0xff] %v161
  $region29: #{encoder_forward.9} parent=0 // pred_fallthru
    _
  // Predicated region
  $region30: #{encoder_forward.9} parent=0 // pred_check
    _
  $region31: #{encoder_forward.9} parent=0 // pred_check_branch
    %164 = sbr.rel (0) target = $region33
  $region32: #{encoder_forward.9} parent=0 // pred_region
    _
  $region33: #{encoder_forward.9} parent=0 // pred_fallthru
    _
  // Predicated region
  $region34: #{encoder_forward.9} parent=0 // pred_check
    _
  $region35: #{encoder_forward.9} parent=0 // pred_check_branch
    %166 = sbr.rel (0) target = $region37
  $region36: #{encoder_forward.9} parent=0 // pred_region
    _
  $region37: #{encoder_forward.9} parent=0 // pred_fallthru
    _

</llo_original>
